<compile_context>
chip_gen: v6e
topology: v6e:2x2x1
jax: 0.10.0
libtpu: 0.0.40
codegen_flags: <defaults>
</compile_context>

<pallas_src>
import functools

import jax
import jax.numpy as jnp
from jax.experimental import pallas as pl
from jax.experimental.pallas import tpu as pltpu


# ----------------------------------------------------------------------------
# Generation-aware VMEM budget + tile picking
# ----------------------------------------------------------------------------
_VMEM_LIMIT_CACHE = [None]


def _vmem_limit_bytes():
    """Scoped-VMEM budget: ~half of physical VMEM, capped at 64 MiB.
    v5e/v6e (128 MiB) -> 64 MiB, v7x (64 MiB) -> 32 MiB, fallback 32 MiB."""
    if _VMEM_LIMIT_CACHE[0] is None:
        cap = None
        try:
            cap = getattr(pltpu.get_tpu_info(), "vmem_capacity_bytes", None)
        except Exception:
            cap = None
        if not cap:
            _VMEM_LIMIT_CACHE[0] = 32 * 1024 * 1024
        else:
            _VMEM_LIMIT_CACHE[0] = int(min(cap // 2, 64 * 1024 * 1024))
    return _VMEM_LIMIT_CACHE[0]


def _cparams(dimension_semantics):
    return pltpu.CompilerParams(dimension_semantics=dimension_semantics,
                                vmem_limit_bytes=_vmem_limit_bytes())


def _pick_tile(dim, max_tile, align):
    """Largest t <= max_tile with t % align == 0 and dim % t == 0.

    Falls back to the full dim (legal as a Pallas block) only when `dim` has no
    align-multiple divisor, and asserts the fallback stays small so we never
    silently build a whole-matrix block (VMEM blowup on v7x)."""
    t0 = (min(max_tile, dim) // align) * align
    for t in range(t0, 0, -align):
        if dim % t == 0:
            return t
    assert dim <= 4096, (
        f"dimension {dim} is not {align}-aligned and too large for a single "
        f"block; pad it in the wrapper (the token axis is padded already)")
    return dim


# ----------------------------------------------------------------------------
# Tiled matmul kernels (K-accumulated, bias-initialized accumulator,
# optional GELU / residual fusion)
# ----------------------------------------------------------------------------
def _matmul_kernel(x_ref, w_ref, b_ref, o_ref, acc_ref, *, act):
    @pl.when(pl.program_id(2) == 0)
    def _():
        # init the f32 accumulator with the broadcast bias -> no epilogue add
        acc_ref[...] = jnp.broadcast_to(b_ref[...], acc_ref.shape)

    acc_ref[...] += jnp.dot(x_ref[...], w_ref[...],
                            preferred_element_type=jnp.float32)

    @pl.when(pl.program_id(2) == pl.num_programs(2) - 1)
    def _():
        y = acc_ref[...]
        if act == "gelu":
            y = 0.5 * y * (1.0 + jax.lax.erf(y * 0.7071067811865476))
        o_ref[...] = y.astype(o_ref.dtype)


def _matmul_res_kernel(x_ref, w_ref, b_ref, r_ref, o_ref, acc_ref):
    @pl.when(pl.program_id(2) == 0)
    def _():
        acc_ref[...] = jnp.broadcast_to(b_ref[...], acc_ref.shape)

    acc_ref[...] += jnp.dot(x_ref[...], w_ref[...],
                            preferred_element_type=jnp.float32)

    @pl.when(pl.program_id(2) == pl.num_programs(2) - 1)
    def _():
        o_ref[...] = (acc_ref[...] +
                      r_ref[...].astype(jnp.float32)).astype(o_ref.dtype)


def matmul_bias(x, w, b, act=None, out_dtype=jnp.bfloat16):
    """y = x @ w + b (optional exact GELU).  x:(M,K) bf16, w:(K,N) bf16, b:(1,N) f32."""
    M, K = x.shape
    N = w.shape[1]
    tm = _pick_tile(M, 1024, 8)     # large tm -> fewer weight re-streams (v5e HBM)
    tn = _pick_tile(N, 512, 128)
    tk = _pick_tile(K, 512, 128)
    kernel = functools.partial(_matmul_kernel, act=act)
    # NOTE: if profiling shows exposed weight DMA, add
    # pipeline_mode=pl.Buffered(3) to the weight BlockSpec below.
    return pl.pallas_call(
        kernel,
        out_shape=jax.ShapeDtypeStruct((M, N), out_dtype),
        grid=(M // tm, N // tn, K // tk),
        in_specs=[
            pl.BlockSpec((tm, tk), lambda i, j, k: (i, k)),
            pl.BlockSpec((tk, tn), lambda i, j, k: (k, j)),
            pl.BlockSpec((1, tn), lambda i, j, k: (0, j)),
        ],
        out_specs=pl.BlockSpec((tm, tn), lambda i, j, k: (i, j)),
        scratch_shapes=[pltpu.VMEM((tm, tn), jnp.float32)],
        compiler_params=_cparams(("parallel", "parallel", "arbitrary")),
    )(x, w, b)


def matmul_bias_residual(x, w, b, residual, out_dtype=jnp.bfloat16):
    """y = x @ w + b + residual.  x:(M,K), w:(K,N), b:(1,N), residual:(M,N)."""
    M, K = x.shape
    N = w.shape[1]
    tm = _pick_tile(M, 1024, 8)
    tn = _pick_tile(N, 512, 128)
    tk = _pick_tile(K, 512, 128)
    return pl.pallas_call(
        _matmul_res_kernel,
        out_shape=jax.ShapeDtypeStruct((M, N), out_dtype),
        grid=(M // tm, N // tn, K // tk),
        in_specs=[
            pl.BlockSpec((tm, tk), lambda i, j, k: (i, k)),
            pl.BlockSpec((tk, tn), lambda i, j, k: (k, j)),
            pl.BlockSpec((1, tn), lambda i, j, k: (0, j)),
            pl.BlockSpec((tm, tn), lambda i, j, k: (i, j)),
        ],
        out_specs=pl.BlockSpec((tm, tn), lambda i, j, k: (i, j)),
        scratch_shapes=[pltpu.VMEM((tm, tn), jnp.float32)],
        compiler_params=_cparams(("parallel", "parallel", "arbitrary")),
    )(x, w, b, residual)


# ----------------------------------------------------------------------------
# Fused LayerNorm -> matmul (+bias, optional GELU) kernel.
# LN is computed once per row tile and cached in a VMEM scratch; the cached
# normalized activations are reused for every output-column tile (j axis is
# "arbitrary" so the reuse pattern is valid and sequential).
# ----------------------------------------------------------------------------
def _ln_matmul_kernel(x_ref, g_ref, bl_ref, w_ref, b_ref, o_ref, h_ref, *, eps, act):
    @pl.when(pl.program_id(1) == 0)
    def _():
        x = x_ref[...].astype(jnp.float32)
        mean = jnp.mean(x, axis=-1, keepdims=True)
        xc = x - mean
        var = jnp.mean(xc * xc, axis=-1, keepdims=True)
        h = xc * jax.lax.rsqrt(var + eps) * g_ref[...] + bl_ref[...]
        h_ref[...] = h.astype(h_ref.dtype)

    y = jnp.dot(h_ref[...], w_ref[...],
                preferred_element_type=jnp.float32) + b_ref[...]
    if act == "gelu":
        y = 0.5 * y * (1.0 + jax.lax.erf(y * 0.7071067811865476))
    o_ref[...] = y.astype(o_ref.dtype)


def ln_matmul_bias(x, g, bl, w, b, act=None, eps=1e-6, out_dtype=jnp.bfloat16):
    """y = LayerNorm(x) @ w + b (optional GELU).  LN over full K per row tile."""
    M, K = x.shape
    N = w.shape[1]
    tm = _pick_tile(M, 512, 8)      # (tm, K) block + (tm, K) LN cache stay small
    tn = _pick_tile(N, 512, 128)
    kernel = functools.partial(_ln_matmul_kernel, eps=eps, act=act)
    return pl.pallas_call(
        kernel,
        out_shape=jax.ShapeDtypeStruct((M, N), out_dtype),
        grid=(M // tm, N // tn),
        in_specs=[
            pl.BlockSpec((tm, K), lambda i, j: (i, 0)),
            pl.BlockSpec((1, K), lambda i, j: (0, 0)),
            pl.BlockSpec((1, K), lambda i, j: (0, 0)),
            pl.BlockSpec((K, tn), lambda i, j: (0, j)),
            pl.BlockSpec((1, tn), lambda i, j: (0, j)),
        ],
        out_specs=pl.BlockSpec((tm, tn), lambda i, j: (i, j)),
        scratch_shapes=[pltpu.VMEM((tm, K), jnp.bfloat16)],
        compiler_params=_cparams(("parallel", "arbitrary")),
    )(x, g, bl, w, b)


# ----------------------------------------------------------------------------
# Attention: one batch element (all heads) per grid step, from the qkv slab.
# Padded keys are masked; per-head outputs are concatenated for a single
# lane-dense (Ntok, D) store.
# ----------------------------------------------------------------------------
def _attn_kernel(qkv_ref, o_ref, *, num_heads, head_dim, scale, n_valid):
    qkv = qkv_ref[0]                                    # (Ntok_pad, 3*D) bf16
    ntok = qkv.shape[0]
    D = num_heads * head_dim

    if n_valid < ntok:
        key_ids = jax.lax.broadcasted_iota(jnp.int32, (1, ntok), 1)
        key_mask = jnp.where(key_ids < n_valid, 0.0, -1e30).astype(jnp.float32)
    else:
        key_mask = None

    # TODO(synk): for production head_dim=64 on v6e/v7x, process head pairs
    # (128-lane-aligned slices) to fill the MXU contraction; omitted here.
    outs = []
    for h in range(num_heads):
        # fold the softmax scale into q: Ntok*hd mults instead of Ntok^2
        q = (qkv[:, h * head_dim:(h + 1) * head_dim].astype(jnp.float32)
             * scale).astype(qkv.dtype)
        k = qkv[:, D + h * head_dim:D + (h + 1) * head_dim]
        v = qkv[:, 2 * D + h * head_dim:2 * D + (h + 1) * head_dim]
        # q @ k^T without an in-kernel transpose: contract head_dim of both.
        s = jax.lax.dot_general(q, k, (((1,), (1,)), ((), ())),
                                preferred_element_type=jnp.float32)
        if key_mask is not None:
            s = s + key_mask                            # mask padded keys
        s = s - jnp.max(s, axis=-1, keepdims=True)
        p = jnp.exp(s)
        p = p * pl.reciprocal(jnp.sum(p, axis=-1, keepdims=True), approx=True)
        outs.append(jnp.dot(p.astype(v.dtype), v,
                            preferred_element_type=jnp.float32))
    # one full-width store instead of num_heads masked 64-lane stores
    o_ref[0] = jnp.concatenate(outs, axis=-1).astype(o_ref.dtype)


def mha_attention(qkv, num_heads, head_dim, scale, n_valid, out_dtype=jnp.bfloat16):
    """qkv: (B, Ntok_pad, 3*D) -> attention output (B, Ntok_pad, D) with heads
    packed along the lane axis (matches transpose(0,2,1,3).reshape())."""
    B, Ntok, threeD = qkv.shape
    D = num_heads * head_dim
    kernel = functools.partial(_attn_kernel, num_heads=num_heads,
                               head_dim=head_dim, scale=scale, n_valid=n_valid)
    return pl.pallas_call(
        kernel,
        out_shape=jax.ShapeDtypeStruct((B, Ntok, D), out_dtype),
        grid=(B,),
        in_specs=[pl.BlockSpec((1, Ntok, threeD), lambda b: (b, 0, 0))],
        out_specs=pl.BlockSpec((1, Ntok, D), lambda b: (b, 0, 0)),
        compiler_params=_cparams(("parallel",)),
    )(qkv)


# ----------------------------------------------------------------------------
# Parameter construction (deterministic, synthetic)
# ----------------------------------------------------------------------------
def init_params(key, *, in_chans, patch_size, embed_dim, depth, num_heads,
                mlp_ratio, num_classes, num_patches):
    mlp_hidden = int(embed_dim * mlp_ratio)
    n_tok = num_patches + 1
    ncls_pad = ((num_classes + 127) // 128) * 128

    def nrm(k, shape, scale=0.02, dtype=jnp.bfloat16):
        return (scale * jax.random.normal(k, shape)).astype(dtype)

    keys = iter(jax.random.split(key, 4 + depth * 4))
    head_w = nrm(next(keys), (embed_dim, num_classes))
    head_w = jnp.pad(head_w, ((0, 0), (0, ncls_pad - num_classes)))
    params = {
        "patch_w": nrm(next(keys), (in_chans * patch_size * patch_size, embed_dim)),
        "patch_b": jnp.zeros((1, embed_dim), jnp.float32),
        "cls_token": nrm(next(keys), (1, 1, embed_dim), dtype=jnp.float32),
        "pos_embed": nrm(next(keys), (1, n_tok, embed_dim), dtype=jnp.float32),
        "norm_g": jnp.ones((1, embed_dim), jnp.float32),
        "norm_b": jnp.zeros((1, embed_dim), jnp.float32),
        "head_w": head_w,
        "head_b": jnp.zeros((1, ncls_pad), jnp.float32),
        "blocks": [],
    }
    for _ in range(depth):
        k_qkv, k_proj, k_fc1, k_fc2 = jax.random.split(next(keys), 4)
        blk = {
            "ln1_g": jnp.ones((1, embed_dim), jnp.float32),
            "ln1_b": jnp.zeros((1, embed_dim), jnp.float32),
            "qkv_w": nrm(k_qkv, (embed_dim, 3 * embed_dim)),
            "qkv_b": jnp.zeros((1, 3 * embed_dim), jnp.float32),
            "proj_w": nrm(k_proj, (embed_dim, embed_dim)),
            "proj_b": jnp.zeros((1, embed_dim), jnp.float32),
            "ln2_g": jnp.ones((1, embed_dim), jnp.float32),
            "ln2_b": jnp.zeros((1, embed_dim), jnp.float32),
            "fc1_w": nrm(k_fc1, (embed_dim, mlp_hidden)),
            "fc1_b": jnp.zeros((1, mlp_hidden), jnp.float32),
            "fc2_w": nrm(k_fc2, (mlp_hidden, embed_dim)),
            "fc2_b": jnp.zeros((1, embed_dim), jnp.float32),
        }
        params["blocks"].append(blk)
    return params


# ----------------------------------------------------------------------------
# Forward pass (glue in JAX, hot paths in fused Pallas kernels)
# ----------------------------------------------------------------------------
def vit_lora_forward(x, params, *, patch_size, num_heads, num_classes, eps=1e-6):
    B, C, H, W = x.shape
    P = patch_size
    nh, nw = H // P, W // P

    # PatchEmbed: Conv2d(C, D, kernel=P, stride=P) == per-patch linear.
    patches = (
        x.reshape(B, C, nh, P, nw, P)
        .transpose(0, 2, 4, 1, 3, 5)
        .reshape(B * nh * nw, C * P * P)
    ).astype(jnp.bfloat16)
    tok = matmul_bias(patches, params["patch_w"], params["patch_b"])     # bf16
    D = tok.shape[-1]
    tok = tok.reshape(B, nh * nw, D)

    cls = jnp.broadcast_to(params["cls_token"], (B, 1, D))
    xtok = (jnp.concatenate([cls, tok.astype(jnp.float32)], axis=1)
            + params["pos_embed"])                                       # (B, Ntok, D) f32
    Ntok = xtok.shape[1]

    # Pad the token axis to a multiple of 16 so M = B*Ntok_pad always has clean
    # MXU tiles (e.g. 197 -> 208 gives M divisible by 1024 for B=64).  Padded
    # keys are masked in attention; padded rows never reach the CLS readout.
    Ntok_pad = ((Ntok + 15) // 16) * 16
    if Ntok_pad != Ntok:
        xtok = jnp.pad(xtok, ((0, 0), (0, Ntok_pad - Ntok), (0, 0)))
    xtok = xtok.astype(jnp.bfloat16)

    head_dim = D // num_heads
    scale = head_dim ** -0.5
    x2d = xtok.reshape(B * Ntok_pad, D)                                  # bf16 residual stream

    # TODO(synk): Attention_lora's lora.Linear q_proj/v_proj are unused in the
    # module's forward (it calls the base Attention.forward), so they are omitted.
    for blk in params["blocks"]:
        # --- attention branch: LN1 -> qkv fused, all-heads attention, proj+residual fused
        qkv = ln_matmul_bias(x2d, blk["ln1_g"], blk["ln1_b"],
                             blk["qkv_w"], blk["qkv_b"], eps=eps)        # (M, 3D)
        attn = mha_attention(qkv.reshape(B, Ntok_pad, 3 * D),
                             num_heads, head_dim, scale, n_valid=Ntok)   # (B, Ntok_pad, D)
        x2d = matmul_bias_residual(attn.reshape(B * Ntok_pad, D),
                                   blk["proj_w"], blk["proj_b"], x2d)

        # --- MLP branch: LN2 -> fc1 + GELU fused, fc2 + residual fused
        h = ln_matmul_bias(x2d, blk["ln2_g"], blk["ln2_b"],
                           blk["fc1_w"], blk["fc1_b"], act="gelu", eps=eps)
        x2d = matmul_bias_residual(h, blk["fc2_w"], blk["fc2_b"], x2d)

    # Final LayerNorm + classification head on the CLS rows only.
    cls_rows = x2d.reshape(B, Ntok_pad, D)[:, 0]                         # (B, D)
    logits_pad = ln_matmul_bias(cls_rows, params["norm_g"], params["norm_b"],
                                params["head_w"], params["head_b"],
                                eps=eps, out_dtype=jnp.float32)          # (B, ncls_pad)
    return logits_pad[:, :num_classes]


# ----------------------------------------------------------------------------
if __name__ == "__main__":
    # small, ViT-consistent shapes
    B, C, IMG, PATCH = 2, 3, 16, 8
    EMBED, DEPTH, HEADS = 32, 2, 4
    MLP_RATIO, NUM_CLASSES = 4.0, 10
    num_patches = (IMG // PATCH) ** 2

    key = jax.random.PRNGKey(0)
    k_x, k_p = jax.random.split(key)
    x = jax.random.normal(k_x, (B, C, IMG, IMG), dtype=jnp.float32)

    params = init_params(
        k_p,
        in_chans=C,
        patch_size=PATCH,
        embed_dim=EMBED,
        depth=DEPTH,
        num_heads=HEADS,
        mlp_ratio=MLP_RATIO,
        num_classes=NUM_CLASSES,
        num_patches=num_patches,
    )

    fwd = jax.jit(functools.partial(vit_lora_forward, patch_size=PATCH,
                                    num_heads=HEADS, num_classes=NUM_CLASSES))
    logits = fwd(x, params)
    logits = jax.block_until_ready(logits)
    assert logits.shape == (B, NUM_CLASSES)
    assert bool(jnp.all(jnp.isfinite(logits)))
    print("KERNEL_OK")
</pallas_src>

<mosaic_0001>
module attributes {stable_mosaic.version = 11 : i64} {
  func.func @_matmul_kernel(%arg0: i32, %arg1: i32, %arg2: i32, %arg3: memref<8x192xbf16, #tpu.memory_space<vmem>>, %arg4: memref<192x32xbf16, #tpu.memory_space<vmem>>, %arg5: memref<1x32xf32, #tpu.memory_space<vmem>>, %arg6: memref<8x32xbf16, #tpu.memory_space<vmem>>, %arg7: memref<8x32xf32, #tpu.memory_space<vmem>>) attributes {dimension_semantics = [#tpu.dimension_semantics<parallel>, #tpu.dimension_semantics<parallel>, #tpu.dimension_semantics<arbitrary>], iteration_bounds = array<i64: 1, 1, 1>, scalar_prefetch = 0 : i64, scratch_operands = 1 : i64, tpu.core_type = #tpu.core_type<tc>, window_params = [{transform_indices = @transform_0, window_bounds = array<i64: 8, 192>}, {transform_indices = @transform_1, window_bounds = array<i64: 192, 32>}, {transform_indices = @transform_2, window_bounds = array<i64: 1, 32>}, {transform_indices = @transform_3, window_bounds = array<i64: 8, 32>}]} {
    %c0_i32 = arith.constant 0 : i32
    %0 = arith.cmpi eq, %arg2, %c0_i32 : i32
    %1 = arith.extui %0 : i1 to i32
    %c0_i32_0 = arith.constant 0 : i32
    %2 = arith.cmpi ne, %1, %c0_i32_0 : i32
    scf.if %2 {
      %c0_10 = arith.constant 0 : index
      %c0_11 = arith.constant 0 : index
      %12 = vector.load %arg5[%c0_10, %c0_11] : memref<1x32xf32, #tpu.memory_space<vmem>>, vector<1x32xf32>
      %13 = vector.shape_cast %12 : vector<1x32xf32> to vector<1x32xf32>
      %14 = vector.broadcast %13 : vector<1x32xf32> to vector<8x32xf32>
      %c0_12 = arith.constant 0 : index
      %c0_13 = arith.constant 0 : index
      %15 = vector.load %arg7[%c0_12, %c0_13] : memref<8x32xf32, #tpu.memory_space<vmem>>, vector<8x32xf32>
      tpu.vector_store %arg7[%c0_12, %c0_13], %14 {strides = array<i32>} : memref<8x32xf32, #tpu.memory_space<vmem>>, vector<8x32xf32>,
    } else {
    }
    %c0 = arith.constant 0 : index
    %c0_1 = arith.constant 0 : index
    %3 = vector.load %arg7[%c0, %c0_1] : memref<8x32xf32, #tpu.memory_space<vmem>>, vector<8x32xf32>
    %c0_2 = arith.constant 0 : index
    %c0_3 = arith.constant 0 : index
    %4 = vector.load %arg3[%c0_2, %c0_3] : memref<8x192xbf16, #tpu.memory_space<vmem>>, vector<8x192xbf16>
    %c0_4 = arith.constant 0 : index
    %c0_5 = arith.constant 0 : index
    %5 = vector.load %arg4[%c0_4, %c0_5] : memref<192x32xbf16, #tpu.memory_space<vmem>>, vector<192x32xbf16>
    %cst = arith.constant dense<0.000000e+00> : vector<8x32xf32>
    %6 = tpu.matmul %4, %5, %cst {dimension_numbers = #tpu.dot_dimension_numbers<[1], [0], [0], [1], [0, 0, 1, 1], [], []>} : vector<8x192xbf16>, vector<192x32xbf16>, vector<8x32xf32> -> vector<8x32xf32>
    %7 = arith.addf %3, %6 : vector<8x32xf32>
    %c0_6 = arith.constant 0 : index
    %c0_7 = arith.constant 0 : index
    %8 = vector.load %arg7[%c0_6, %c0_7] : memref<8x32xf32, #tpu.memory_space<vmem>>, vector<8x32xf32>
    tpu.vector_store %arg7[%c0_6, %c0_7], %7 {strides = array<i32>} : memref<8x32xf32, #tpu.memory_space<vmem>>, vector<8x32xf32>,
    %c0_i32_8 = arith.constant 0 : i32
    %9 = arith.cmpi eq, %arg2, %c0_i32_8 : i32
    %10 = arith.extui %9 : i1 to i32
    %c0_i32_9 = arith.constant 0 : i32
    %11 = arith.cmpi ne, %10, %c0_i32_9 : i32
    scf.if %11 {
      %c0_10 = arith.constant 0 : index
      %c0_11 = arith.constant 0 : index
      %12 = vector.load %arg7[%c0_10, %c0_11] : memref<8x32xf32, #tpu.memory_space<vmem>>, vector<8x32xf32>
      %13 = arith.truncf %12 : vector<8x32xf32> to vector<8x32xbf16>
      %c0_12 = arith.constant 0 : index
      %c0_13 = arith.constant 0 : index
      %14 = vector.load %arg6[%c0_12, %c0_13] : memref<8x32xbf16, #tpu.memory_space<vmem>>, vector<8x32xbf16>
      tpu.vector_store %arg6[%c0_12, %c0_13], %13 {strides = array<i32>} : memref<8x32xbf16, #tpu.memory_space<vmem>>, vector<8x32xbf16>,
    } else {
    }
    return
  }
  func.func @transform_0(%arg0: i32, %arg1: i32, %arg2: i32) -> (i32, i32) {
    %c0_i32 = arith.constant 0 : i32
    return %arg0, %arg2 : i32, i32
  }
  func.func @transform_1(%arg0: i32, %arg1: i32, %arg2: i32) -> (i32, i32) {
    %c0_i32 = arith.constant 0 : i32
    return %arg2, %arg1 : i32, i32
  }
  func.func @transform_2(%arg0: i32, %arg1: i32, %arg2: i32) -> (i32, i32) {
    %c0_i32 = arith.constant 0 : i32
    %c0_i32_0 = arith.constant 0 : i32
    return %c0_i32, %arg1 : i32, i32
  }
  func.func @transform_3(%arg0: i32, %arg1: i32, %arg2: i32) -> (i32, i32) {
    %c0_i32 = arith.constant 0 : i32
    return %arg0, %arg1 : i32, i32
  }
}

module attributes {stable_mosaic.version = 11 : i64} {
  func.func @_ln_matmul_kernel(%arg0: i32, %arg1: i32, %arg2: memref<32x32xbf16, #tpu.memory_space<vmem>>, %arg3: memref<1x32xf32, #tpu.memory_space<vmem>>, %arg4: memref<1x32xf32, #tpu.memory_space<vmem>>, %arg5: memref<32x96xbf16, #tpu.memory_space<vmem>>, %arg6: memref<1x96xf32, #tpu.memory_space<vmem>>, %arg7: memref<32x96xbf16, #tpu.memory_space<vmem>>, %arg8: memref<32x32xbf16, #tpu.memory_space<vmem>>) attributes {dimension_semantics = [#tpu.dimension_semantics<parallel>, #tpu.dimension_semantics<arbitrary>], iteration_bounds = array<i64: 1, 1>, scalar_prefetch = 0 : i64, scratch_operands = 1 : i64, tpu.core_type = #tpu.core_type<tc>, window_params = [{transform_indices = @transform_0, window_bounds = array<i64: 32, 32>}, {pipeline_mode = #tpu.pipeline_mode<synchronous>, transform_indices = @transform_1, window_bounds = array<i64: 1, 32>}, {pipeline_mode = #tpu.pipeline_mode<synchronous>, transform_indices = @transform_2, window_bounds = array<i64: 1, 32>}, {transform_indices = @transform_3, window_bounds = array<i64: 32, 96>}, {transform_indices = @transform_4, window_bounds = array<i64: 1, 96>}, {transform_indices = @transform_5, window_bounds = array<i64: 32, 96>}]} {
    %c0_i32 = arith.constant 0 : i32
    %0 = arith.cmpi eq, %arg1, %c0_i32 : i32
    %1 = arith.extui %0 : i1 to i32
    %c0_i32_0 = arith.constant 0 : i32
    %2 = arith.cmpi ne, %1, %c0_i32_0 : i32
    scf.if %2 {
      %c0_8 = arith.constant 0 : index
      %c0_9 = arith.constant 0 : index
      %11 = vector.load %arg2[%c0_8, %c0_9] : memref<32x32xbf16, #tpu.memory_space<vmem>>, vector<32x32xbf16>
      %12 = arith.extf %11 : vector<32x32xbf16> to vector<32x32xf32>
      %cst_10 = arith.constant dense<0.000000e+00> : vector<32xf32>
      %13 = vector.multi_reduction <add>, %12, %cst_10 [1] : vector<32x32xf32> to vector<32xf32>
      %14 = vector.shape_cast %13 : vector<32xf32> to vector<32x1xf32>
      %cst_11 = arith.constant 3.200000e+01 : f32
      %15 = vector.broadcast %cst_11 : f32 to vector<32x1xf32>
      %16 = arith.divf %14, %15 : vector<32x1xf32>
      %17 = vector.broadcast %16 : vector<32x1xf32> to vector<32x32xf32>
      %18 = arith.subf %12, %17 : vector<32x32xf32>
      %19 = arith.mulf %18, %18 : vector<32x32xf32>
      %cst_12 = arith.constant dense<0.000000e+00> : vector<32xf32>
      %20 = vector.multi_reduction <add>, %19, %cst_12 [1] : vector<32x32xf32> to vector<32xf32>
      %21 = vector.shape_cast %20 : vector<32xf32> to vector<32x1xf32>
      %cst_13 = arith.constant 3.200000e+01 : f32
      %22 = vector.broadcast %cst_13 : f32 to vector<32x1xf32>
      %23 = arith.divf %21, %22 : vector<32x1xf32>
      %cst_14 = arith.constant 9.99999997E-7 : f32
      %24 = vector.broadcast %cst_14 : f32 to vector<32x1xf32>
      %25 = arith.addf %23, %24 : vector<32x1xf32>
      %26 = math.rsqrt %25 : vector<32x1xf32>
      %27 = vector.broadcast %26 : vector<32x1xf32> to vector<32x32xf32>
      %28 = arith.mulf %18, %27 : vector<32x32xf32>
      %c0_15 = arith.constant 0 : index
      %c0_16 = arith.constant 0 : index
      %29 = vector.load %arg3[%c0_15, %c0_16] : memref<1x32xf32, #tpu.memory_space<vmem>>, vector<1x32xf32>
      %30 = vector.broadcast %29 : vector<1x32xf32> to vector<32x32xf32>
      %31 = arith.mulf %28, %30 : vector<32x32xf32>
      %c0_17 = arith.constant 0 : index
      %c0_18 = arith.constant 0 : index
      %32 = vector.load %arg4[%c0_17, %c0_18] : memref<1x32xf32, #tpu.memory_space<vmem>>, vector<1x32xf32>
      %33 = vector.broadcast %32 : vector<1x32xf32> to vector<32x32xf32>
      %34 = arith.addf %31, %33 : vector<32x32xf32>
      %35 = arith.truncf %34 : vector<32x32xf32> to vector<32x32xbf16>
      %c0_19 = arith.constant 0 : index
      %c0_20 = arith.constant 0 : index
      %36 = vector.load %arg8[%c0_19, %c0_20] : memref<32x32xbf16, #tpu.memory_space<vmem>>, vector<32x32xbf16>
      tpu.vector_store %arg8[%c0_19, %c0_20], %35 {strides = array<i32>} : memref<32x32xbf16, #tpu.memory_space<vmem>>, vector<32x32xbf16>,
    } else {
    }
    %c0 = arith.constant 0 : index
    %c0_1 = arith.constant 0 : index
    %3 = vector.load %arg8[%c0, %c0_1] : memref<32x32xbf16, #tpu.memory_space<vmem>>, vector<32x32xbf16>
    %c0_2 = arith.constant 0 : index
    %c0_3 = arith.constant 0 : index
    %4 = vector.load %arg5[%c0_2, %c0_3] : memref<32x96xbf16, #tpu.memory_space<vmem>>, vector<32x96xbf16>
    %cst = arith.constant dense<0.000000e+00> : vector<32x96xf32>
    %5 = tpu.matmul %3, %4, %cst {dimension_numbers = #tpu.dot_dimension_numbers<[1], [0], [0], [1], [0, 0, 1, 1], [], []>} : vector<32x32xbf16>, vector<32x96xbf16>, vector<32x96xf32> -> vector<32x96xf32>
    %c0_4 = arith.constant 0 : index
    %c0_5 = arith.constant 0 : index
    %6 = vector.load %arg6[%c0_4, %c0_5] : memref<1x96xf32, #tpu.memory_space<vmem>>, vector<1x96xf32>
    %7 = vector.broadcast %6 : vector<1x96xf32> to vector<32x96xf32>
    %8 = arith.addf %5, %7 : vector<32x96xf32>
    %9 = arith.truncf %8 : vector<32x96xf32> to vector<32x96xbf16>
    %c0_6 = arith.constant 0 : index
    %c0_7 = arith.constant 0 : index
    %10 = vector.load %arg7[%c0_6, %c0_7] : memref<32x96xbf16, #tpu.memory_space<vmem>>, vector<32x96xbf16>
    tpu.vector_store %arg7[%c0_6, %c0_7], %9 {strides = array<i32>} : memref<32x96xbf16, #tpu.memory_space<vmem>>, vector<32x96xbf16>,
    return
  }
  func.func @transform_0(%arg0: i32, %arg1: i32) -> (i32, i32) {
    %c0_i32 = arith.constant 0 : i32
    %c0_i32_0 = arith.constant 0 : i32
    return %arg0, %c0_i32 : i32, i32
  }
  func.func @transform_1(%arg0: i32, %arg1: i32) -> (i32, i32) {
    %c0_i32 = arith.constant 0 : i32
    %c0_i32_0 = arith.constant 0 : i32
    %c0_i32_1 = arith.constant 0 : i32
    return %c0_i32, %c0_i32_0 : i32, i32
  }
  func.func @transform_2(%arg0: i32, %arg1: i32) -> (i32, i32) {
    %c0_i32 = arith.constant 0 : i32
    %c0_i32_0 = arith.constant 0 : i32
    %c0_i32_1 = arith.constant 0 : i32
    return %c0_i32, %c0_i32_0 : i32, i32
  }
  func.func @transform_3(%arg0: i32, %arg1: i32) -> (i32, i32) {
    %c0_i32 = arith.constant 0 : i32
    %c0_i32_0 = arith.constant 0 : i32
    return %c0_i32, %arg1 : i32, i32
  }
  func.func @transform_4(%arg0: i32, %arg1: i32) -> (i32, i32) {
    %c0_i32 = arith.constant 0 : i32
    %c0_i32_0 = arith.constant 0 : i32
    return %c0_i32, %arg1 : i32, i32
  }
  func.func @transform_5(%arg0: i32, %arg1: i32) -> (i32, i32) {
    %c0_i32 = arith.constant 0 : i32
    return %arg0, %arg1 : i32, i32
  }
}

module attributes {stable_mosaic.version = 11 : i64} {
  func.func @_matmul_res_kernel(%arg0: i32, %arg1: i32, %arg2: i32, %arg3: memref<32x32xbf16, #tpu.memory_space<vmem>>, %arg4: memref<32x32xbf16, #tpu.memory_space<vmem>>, %arg5: memref<1x32xf32, #tpu.memory_space<vmem>>, %arg6: memref<32x32xbf16, #tpu.memory_space<vmem>>, %arg7: memref<32x32xbf16, #tpu.memory_space<vmem>>, %arg8: memref<32x32xf32, #tpu.memory_space<vmem>>) attributes {dimension_semantics = [#tpu.dimension_semantics<parallel>, #tpu.dimension_semantics<parallel>, #tpu.dimension_semantics<arbitrary>], iteration_bounds = array<i64: 1, 1, 1>, scalar_prefetch = 0 : i64, scratch_operands = 1 : i64, tpu.core_type = #tpu.core_type<tc>, window_params = [{transform_indices = @transform_0, window_bounds = array<i64: 32, 32>}, {transform_indices = @transform_1, window_bounds = array<i64: 32, 32>}, {transform_indices = @transform_2, window_bounds = array<i64: 1, 32>}, {transform_indices = @transform_3, window_bounds = array<i64: 32, 32>}, {transform_indices = @transform_4, window_bounds = array<i64: 32, 32>}]} {
    %c0_i32 = arith.constant 0 : i32
    %0 = arith.cmpi eq, %arg2, %c0_i32 : i32
    %1 = arith.extui %0 : i1 to i32
    %c0_i32_0 = arith.constant 0 : i32
    %2 = arith.cmpi ne, %1, %c0_i32_0 : i32
    scf.if %2 {
      %c0_10 = arith.constant 0 : index
      %c0_11 = arith.constant 0 : index
      %12 = vector.load %arg5[%c0_10, %c0_11] : memref<1x32xf32, #tpu.memory_space<vmem>>, vector<1x32xf32>
      %13 = vector.shape_cast %12 : vector<1x32xf32> to vector<1x32xf32>
      %14 = vector.broadcast %13 : vector<1x32xf32> to vector<32x32xf32>
      %c0_12 = arith.constant 0 : index
      %c0_13 = arith.constant 0 : index
      %15 = vector.load %arg8[%c0_12, %c0_13] : memref<32x32xf32, #tpu.memory_space<vmem>>, vector<32x32xf32>
      tpu.vector_store %arg8[%c0_12, %c0_13], %14 {strides = array<i32>} : memref<32x32xf32, #tpu.memory_space<vmem>>, vector<32x32xf32>,
    } else {
    }
    %c0 = arith.constant 0 : index
    %c0_1 = arith.constant 0 : index
    %3 = vector.load %arg8[%c0, %c0_1] : memref<32x32xf32, #tpu.memory_space<vmem>>, vector<32x32xf32>
    %c0_2 = arith.constant 0 : index
    %c0_3 = arith.constant 0 : index
    %4 = vector.load %arg3[%c0_2, %c0_3] : memref<32x32xbf16, #tpu.memory_space<vmem>>, vector<32x32xbf16>
    %c0_4 = arith.constant 0 : index
    %c0_5 = arith.constant 0 : index
    %5 = vector.load %arg4[%c0_4, %c0_5] : memref<32x32xbf16, #tpu.memory_space<vmem>>, vector<32x32xbf16>
    %cst = arith.constant dense<0.000000e+00> : vector<32x32xf32>
    %6 = tpu.matmul %4, %5, %cst {dimension_numbers = #tpu.dot_dimension_numbers<[1], [0], [0], [1], [0, 0, 1, 1], [], []>} : vector<32x32xbf16>, vector<32x32xbf16>, vector<32x32xf32> -> vector<32x32xf32>
    %7 = arith.addf %3, %6 : vector<32x32xf32>
    %c0_6 = arith.constant 0 : index
    %c0_7 = arith.constant 0 : index
    %8 = vector.load %arg8[%c0_6, %c0_7] : memref<32x32xf32, #tpu.memory_space<vmem>>, vector<32x32xf32>
    tpu.vector_store %arg8[%c0_6, %c0_7], %7 {strides = array<i32>} : memref<32x32xf32, #tpu.memory_space<vmem>>, vector<32x32xf32>,
    %c0_i32_8 = arith.constant 0 : i32
    %9 = arith.cmpi eq, %arg2, %c0_i32_8 : i32
    %10 = arith.extui %9 : i1 to i32
    %c0_i32_9 = arith.constant 0 : i32
    %11 = arith.cmpi ne, %10, %c0_i32_9 : i32
    scf.if %11 {
      %c0_10 = arith.constant 0 : index
      %c0_11 = arith.constant 0 : index
      %12 = vector.load %arg8[%c0_10, %c0_11] : memref<32x32xf32, #tpu.memory_space<vmem>>, vector<32x32xf32>
      %c0_12 = arith.constant 0 : index
      %c0_13 = arith.constant 0 : index
      %13 = vector.load %arg6[%c0_12, %c0_13] : memref<32x32xbf16, #tpu.memory_space<vmem>>, vector<32x32xbf16>
      %14 = arith.extf %13 : vector<32x32xbf16> to vector<32x32xf32>
      %15 = arith.addf %12, %14 : vector<32x32xf32>
      %16 = arith.truncf %15 : vector<32x32xf32> to vector<32x32xbf16>
      %c0_14 = arith.constant 0 : index
      %c0_15 = arith.constant 0 : index
      %17 = vector.load %arg7[%c0_14, %c0_15] : memref<32x32xbf16, #tpu.memory_space<vmem>>, vector<32x32xbf16>
      tpu.vector_store %arg7[%c0_14, %c0_15], %16 {strides = array<i32>} : memref<32x32xbf16, #tpu.memory_space<vmem>>, vector<32x32xbf16>,
    } else {
    }
    return
  }
  func.func @transform_0(%arg0: i32, %arg1: i32, %arg2: i32) -> (i32, i32) {
    %c0_i32 = arith.constant 0 : i32
    return %arg0, %arg2 : i32, i32
  }
  func.func @transform_1(%arg0: i32, %arg1: i32, %arg2: i32) -> (i32, i32) {
    %c0_i32 = arith.constant 0 : i32
    return %arg2, %arg1 : i32, i32
  }
  func.func @transform_2(%arg0: i32, %arg1: i32, %arg2: i32) -> (i32, i32) {
    %c0_i32 = arith.constant 0 : i32
    %c0_i32_0 = arith.constant 0 : i32
    return %c0_i32, %arg1 : i32, i32
  }
  func.func @transform_3(%arg0: i32, %arg1: i32, %arg2: i32) -> (i32, i32) {
    %c0_i32 = arith.constant 0 : i32
    return %arg0, %arg1 : i32, i32
  }
  func.func @transform_4(%arg0: i32, %arg1: i32, %arg2: i32) -> (i32, i32) {
    %c0_i32 = arith.constant 0 : i32
    return %arg0, %arg1 : i32, i32
  }
}

module attributes {stable_mosaic.version = 11 : i64} {
  func.func @_attn_kernel(%arg0: i32, %arg1: memref<1x16x96xbf16, #tpu.memory_space<vmem>>, %arg2: memref<1x16x32xbf16, #tpu.memory_space<vmem>>) attributes {dimension_semantics = [#tpu.dimension_semantics<parallel>], iteration_bounds = array<i64: 2>, scalar_prefetch = 0 : i64, scratch_operands = 0 : i64, tpu.core_type = #tpu.core_type<tc>, window_params = [{transform_indices = @transform_0, window_bounds = array<i64: 1, 16, 96>}, {transform_indices = @transform_1, window_bounds = array<i64: 1, 16, 32>}]} {
    %c0 = arith.constant 0 : index
    %c0_0 = arith.constant 0 : index
    %c0_1 = arith.constant 0 : index
    %0 = vector.load %arg1[%c0, %c0_0, %c0_1] : memref<1x16x96xbf16, #tpu.memory_space<vmem>>, vector<1x16x96xbf16>
    %1 = vector.shape_cast %0 : vector<1x16x96xbf16> to vector<16x96xbf16>
    %2 = tpu.iota {dimensions = array<i32: 1>} : vector<1x16xi32>
    %c5_i32 = arith.constant 5 : i32
    %3 = vector.broadcast %c5_i32 : i32 to vector<1x16xi32>
    %4 = arith.cmpi slt, %2, %3 : vector<1x16xi32>
    %cst = arith.constant 0.000000e+00 : f32
    %cst_2 = arith.constant -1.000000e+30 : f32
    %5 = vector.broadcast %cst : f32 to vector<1x16xf32>
    %6 = vector.broadcast %cst_2 : f32 to vector<1x16xf32>
    %7 = arith.select %4, %5, %6 : vector<1x16xi1>, vector<1x16xf32>
    %8 = vector.extract_strided_slice %1 {offsets = [0, 0], sizes = [16, 8], strides = [1, 1]} : vector<16x96xbf16> to vector<16x8xbf16>
    %9 = arith.extf %8 : vector<16x8xbf16> to vector<16x8xf32>
    %cst_3 = arith.constant 0.353553385 : f32
    %10 = vector.broadcast %cst_3 : f32 to vector<16x8xf32>
    %11 = arith.mulf %9, %10 : vector<16x8xf32>
    %12 = arith.truncf %11 : vector<16x8xf32> to vector<16x8xbf16>
    %13 = vector.extract_strided_slice %1 {offsets = [0, 32], sizes = [16, 8], strides = [1, 1]} : vector<16x96xbf16> to vector<16x8xbf16>
    %14 = vector.extract_strided_slice %1 {offsets = [0, 64], sizes = [16, 8], strides = [1, 1]} : vector<16x96xbf16> to vector<16x8xbf16>
    %cst_4 = arith.constant dense<0.000000e+00> : vector<16x16xf32>
    %15 = tpu.matmul %12, %13, %cst_4 {dimension_numbers = #tpu.dot_dimension_numbers<[1], [1], [0], [0], [0, 0, 1, 0], [], []>} : vector<16x8xbf16>, vector<16x8xbf16>, vector<16x16xf32> -> vector<16x16xf32>
    %16 = vector.broadcast %7 : vector<1x16xf32> to vector<16x16xf32>
    %17 = arith.addf %15, %16 : vector<16x16xf32>
    %cst_5 = arith.constant dense<0xFF800000> : vector<16xf32>
    %18 = vector.multi_reduction <maximumf>, %17, %cst_5 [1] : vector<16x16xf32> to vector<16xf32>
    %19 = vector.shape_cast %18 : vector<16xf32> to vector<16x1xf32>
    %20 = vector.broadcast %19 : vector<16x1xf32> to vector<16x16xf32>
    %21 = arith.subf %17, %20 : vector<16x16xf32>
    %22 = math.exp %21 : vector<16x16xf32>
    %cst_6 = arith.constant dense<0.000000e+00> : vector<16xf32>
    %23 = vector.multi_reduction <add>, %22, %cst_6 [1] : vector<16x16xf32> to vector<16xf32>
    %24 = vector.shape_cast %23 : vector<16xf32> to vector<16x1xf32>
    %25 = tpu.reciprocal %24 {approx = true} : vector<16x1xf32> -> vector<16x1xf32>
    %26 = vector.broadcast %25 : vector<16x1xf32> to vector<16x16xf32>
    %27 = arith.mulf %22, %26 : vector<16x16xf32>
    %28 = arith.truncf %27 : vector<16x16xf32> to vector<16x16xbf16>
    %cst_7 = arith.constant dense<0.000000e+00> : vector<16x8xf32>
    %29 = tpu.matmul %28, %14, %cst_7 {dimension_numbers = #tpu.dot_dimension_numbers<[1], [0], [0], [1], [0, 0, 1, 1], [], []>} : vector<16x16xbf16>, vector<16x8xbf16>, vector<16x8xf32> -> vector<16x8xf32>
    %30 = vector.extract_strided_slice %1 {offsets = [0, 8], sizes = [16, 8], strides = [1, 1]} : vector<16x96xbf16> to vector<16x8xbf16>
    %31 = arith.extf %30 : vector<16x8xbf16> to vector<16x8xf32>
    %cst_8 = arith.constant 0.353553385 : f32
    %32 = vector.broadcast %cst_8 : f32 to vector<16x8xf32>
    %33 = arith.mulf %31, %32 : vector<16x8xf32>
    %34 = arith.truncf %33 : vector<16x8xf32> to vector<16x8xbf16>
    %35 = vector.extract_strided_slice %1 {offsets = [0, 40], sizes = [16, 8], strides = [1, 1]} : vector<16x96xbf16> to vector<16x8xbf16>
    %36 = vector.extract_strided_slice %1 {offsets = [0, 72], sizes = [16, 8], strides = [1, 1]} : vector<16x96xbf16> to vector<16x8xbf16>
    %cst_9 = arith.constant dense<0.000000e+00> : vector<16x16xf32>
    %37 = tpu.matmul %34, %35, %cst_9 {dimension_numbers = #tpu.dot_dimension_numbers<[1], [1], [0], [0], [0, 0, 1, 0], [], []>} : vector<16x8xbf16>, vector<16x8xbf16>, vector<16x16xf32> -> vector<16x16xf32>
    %38 = vector.broadcast %7 : vector<1x16xf32> to vector<16x16xf32>
    %39 = arith.addf %37, %38 : vector<16x16xf32>
    %cst_10 = arith.constant dense<0xFF800000> : vector<16xf32>
    %40 = vector.multi_reduction <maximumf>, %39, %cst_10 [1] : vector<16x16xf32> to vector<16xf32>
    %41 = vector.shape_cast %40 : vector<16xf32> to vector<16x1xf32>
    %42 = vector.broadcast %41 : vector<16x1xf32> to vector<16x16xf32>
    %43 = arith.subf %39, %42 : vector<16x16xf32>
    %44 = math.exp %43 : vector<16x16xf32>
    %cst_11 = arith.constant dense<0.000000e+00> : vector<16xf32>
    %45 = vector.multi_reduction <add>, %44, %cst_11 [1] : vector<16x16xf32> to vector<16xf32>
    %46 = vector.shape_cast %45 : vector<16xf32> to vector<16x1xf32>
    %47 = tpu.reciprocal %46 {approx = true} : vector<16x1xf32> -> vector<16x1xf32>
    %48 = vector.broadcast %47 : vector<16x1xf32> to vector<16x16xf32>
    %49 = arith.mulf %44, %48 : vector<16x16xf32>
    %50 = arith.truncf %49 : vector<16x16xf32> to vector<16x16xbf16>
    %cst_12 = arith.constant dense<0.000000e+00> : vector<16x8xf32>
    %51 = tpu.matmul %50, %36, %cst_12 {dimension_numbers = #tpu.dot_dimension_numbers<[1], [0], [0], [1], [0, 0, 1, 1], [], []>} : vector<16x16xbf16>, vector<16x8xbf16>, vector<16x8xf32> -> vector<16x8xf32>
    %52 = vector.extract_strided_slice %1 {offsets = [0, 16], sizes = [16, 8], strides = [1, 1]} : vector<16x96xbf16> to vector<16x8xbf16>
    %53 = arith.extf %52 : vector<16x8xbf16> to vector<16x8xf32>
    %cst_13 = arith.constant 0.353553385 : f32
    %54 = vector.broadcast %cst_13 : f32 to vector<16x8xf32>
    %55 = arith.mulf %53, %54 : vector<16x8xf32>
    %56 = arith.truncf %55 : vector<16x8xf32> to vector<16x8xbf16>
    %57 = vector.extract_strided_slice %1 {offsets = [0, 48], sizes = [16, 8], strides = [1, 1]} : vector<16x96xbf16> to vector<16x8xbf16>
    %58 = vector.extract_strided_slice %1 {offsets = [0, 80], sizes = [16, 8], strides = [1, 1]} : vector<16x96xbf16> to vector<16x8xbf16>
    %cst_14 = arith.constant dense<0.000000e+00> : vector<16x16xf32>
    %59 = tpu.matmul %56, %57, %cst_14 {dimension_numbers = #tpu.dot_dimension_numbers<[1], [1], [0], [0], [0, 0, 1, 0], [], []>} : vector<16x8xbf16>, vector<16x8xbf16>, vector<16x16xf32> -> vector<16x16xf32>
    %60 = vector.broadcast %7 : vector<1x16xf32> to vector<16x16xf32>
    %61 = arith.addf %59, %60 : vector<16x16xf32>
    %cst_15 = arith.constant dense<0xFF800000> : vector<16xf32>
    %62 = vector.multi_reduction <maximumf>, %61, %cst_15 [1] : vector<16x16xf32> to vector<16xf32>
    %63 = vector.shape_cast %62 : vector<16xf32> to vector<16x1xf32>
    %64 = vector.broadcast %63 : vector<16x1xf32> to vector<16x16xf32>
    %65 = arith.subf %61, %64 : vector<16x16xf32>
    %66 = math.exp %65 : vector<16x16xf32>
    %cst_16 = arith.constant dense<0.000000e+00> : vector<16xf32>
    %67 = vector.multi_reduction <add>, %66, %cst_16 [1] : vector<16x16xf32> to vector<16xf32>
    %68 = vector.shape_cast %67 : vector<16xf32> to vector<16x1xf32>
    %69 = tpu.reciprocal %68 {approx = true} : vector<16x1xf32> -> vector<16x1xf32>
    %70 = vector.broadcast %69 : vector<16x1xf32> to vector<16x16xf32>
    %71 = arith.mulf %66, %70 : vector<16x16xf32>
    %72 = arith.truncf %71 : vector<16x16xf32> to vector<16x16xbf16>
    %cst_17 = arith.constant dense<0.000000e+00> : vector<16x8xf32>
    %73 = tpu.matmul %72, %58, %cst_17 {dimension_numbers = #tpu.dot_dimension_numbers<[1], [0], [0], [1], [0, 0, 1, 1], [], []>} : vector<16x16xbf16>, vector<16x8xbf16>, vector<16x8xf32> -> vector<16x8xf32>
    %74 = vector.extract_strided_slice %1 {offsets = [0, 24], sizes = [16, 8], strides = [1, 1]} : vector<16x96xbf16> to vector<16x8xbf16>
    %75 = arith.extf %74 : vector<16x8xbf16> to vector<16x8xf32>
    %cst_18 = arith.constant 0.353553385 : f32
    %76 = vector.broadcast %cst_18 : f32 to vector<16x8xf32>
    %77 = arith.mulf %75, %76 : vector<16x8xf32>
    %78 = arith.truncf %77 : vector<16x8xf32> to vector<16x8xbf16>
    %79 = vector.extract_strided_slice %1 {offsets = [0, 56], sizes = [16, 8], strides = [1, 1]} : vector<16x96xbf16> to vector<16x8xbf16>
    %80 = vector.extract_strided_slice %1 {offsets = [0, 88], sizes = [16, 8], strides = [1, 1]} : vector<16x96xbf16> to vector<16x8xbf16>
    %cst_19 = arith.constant dense<0.000000e+00> : vector<16x16xf32>
    %81 = tpu.matmul %78, %79, %cst_19 {dimension_numbers = #tpu.dot_dimension_numbers<[1], [1], [0], [0], [0, 0, 1, 0], [], []>} : vector<16x8xbf16>, vector<16x8xbf16>, vector<16x16xf32> -> vector<16x16xf32>
    %82 = vector.broadcast %7 : vector<1x16xf32> to vector<16x16xf32>
    %83 = arith.addf %81, %82 : vector<16x16xf32>
    %cst_20 = arith.constant dense<0xFF800000> : vector<16xf32>
    %84 = vector.multi_reduction <maximumf>, %83, %cst_20 [1] : vector<16x16xf32> to vector<16xf32>
    %85 = vector.shape_cast %84 : vector<16xf32> to vector<16x1xf32>
    %86 = vector.broadcast %85 : vector<16x1xf32> to vector<16x16xf32>
    %87 = arith.subf %83, %86 : vector<16x16xf32>
    %88 = math.exp %87 : vector<16x16xf32>
    %cst_21 = arith.constant dense<0.000000e+00> : vector<16xf32>
    %89 = vector.multi_reduction <add>, %88, %cst_21 [1] : vector<16x16xf32> to vector<16xf32>
    %90 = vector.shape_cast %89 : vector<16xf32> to vector<16x1xf32>
    %91 = tpu.reciprocal %90 {approx = true} : vector<16x1xf32> -> vector<16x1xf32>
    %92 = vector.broadcast %91 : vector<16x1xf32> to vector<16x16xf32>
    %93 = arith.mulf %88, %92 : vector<16x16xf32>
    %94 = arith.truncf %93 : vector<16x16xf32> to vector<16x16xbf16>
    %cst_22 = arith.constant dense<0.000000e+00> : vector<16x8xf32>
    %95 = tpu.matmul %94, %80, %cst_22 {dimension_numbers = #tpu.dot_dimension_numbers<[1], [0], [0], [1], [0, 0, 1, 1], [], []>} : vector<16x16xbf16>, vector<16x8xbf16>, vector<16x8xf32> -> vector<16x8xf32>
    %96 = tpu.concatenate %29, %51, %73, %95 in 1 : vector<16x8xf32>, vector<16x8xf32>, vector<16x8xf32>, vector<16x8xf32> -> vector<16x32xf32>
    %97 = arith.truncf %96 : vector<16x32xf32> to vector<16x32xbf16>
    %c0_23 = arith.constant 0 : index
    %c0_24 = arith.constant 0 : index
    %c0_25 = arith.constant 0 : index
    %98 = vector.load %arg2[%c0_23, %c0_24, %c0_25] : memref<1x16x32xbf16, #tpu.memory_space<vmem>>, vector<1x16x32xbf16>
    %99 = vector.shape_cast %98 : vector<1x16x32xbf16> to vector<16x32xbf16>
    %100 = vector.shape_cast %97 : vector<16x32xbf16> to vector<1x16x32xbf16>
    tpu.vector_store %arg2[%c0_23, %c0_24, %c0_25], %100 {strides = array<i32>} : memref<1x16x32xbf16, #tpu.memory_space<vmem>>, vector<1x16x32xbf16>,
    return
  }
  func.func @transform_0(%arg0: i32) -> (i32, i32, i32) {
    %c0_i32 = arith.constant 0 : i32
    %c0_i32_0 = arith.constant 0 : i32
    %c0_i32_1 = arith.constant 0 : i32
    return %arg0, %c0_i32, %c0_i32_0 : i32, i32, i32
  }
  func.func @transform_1(%arg0: i32) -> (i32, i32, i32) {
    %c0_i32 = arith.constant 0 : i32
    %c0_i32_0 = arith.constant 0 : i32
    %c0_i32_1 = arith.constant 0 : i32
    return %arg0, %c0_i32, %c0_i32_0 : i32, i32, i32
  }
}

module attributes {stable_mosaic.version = 11 : i64} {
  func.func @_ln_matmul_kernel(%arg0: i32, %arg1: i32, %arg2: memref<32x32xbf16, #tpu.memory_space<vmem>>, %arg3: memref<1x32xf32, #tpu.memory_space<vmem>>, %arg4: memref<1x32xf32, #tpu.memory_space<vmem>>, %arg5: memref<32x128xbf16, #tpu.memory_space<vmem>>, %arg6: memref<1x128xf32, #tpu.memory_space<vmem>>, %arg7: memref<32x128xbf16, #tpu.memory_space<vmem>>, %arg8: memref<32x32xbf16, #tpu.memory_space<vmem>>) attributes {dimension_semantics = [#tpu.dimension_semantics<parallel>, #tpu.dimension_semantics<arbitrary>], iteration_bounds = array<i64: 1, 1>, scalar_prefetch = 0 : i64, scratch_operands = 1 : i64, tpu.core_type = #tpu.core_type<tc>, window_params = [{transform_indices = @transform_0, window_bounds = array<i64: 32, 32>}, {pipeline_mode = #tpu.pipeline_mode<synchronous>, transform_indices = @transform_1, window_bounds = array<i64: 1, 32>}, {pipeline_mode = #tpu.pipeline_mode<synchronous>, transform_indices = @transform_2, window_bounds = array<i64: 1, 32>}, {transform_indices = @transform_3, window_bounds = array<i64: 32, 128>}, {transform_indices = @transform_4, window_bounds = array<i64: 1, 128>}, {transform_indices = @transform_5, window_bounds = array<i64: 32, 128>}]} {
    %c0_i32 = arith.constant 0 : i32
    %0 = arith.cmpi eq, %arg1, %c0_i32 : i32
    %1 = arith.extui %0 : i1 to i32
    %c0_i32_0 = arith.constant 0 : i32
    %2 = arith.cmpi ne, %1, %c0_i32_0 : i32
    scf.if %2 {
      %c0_11 = arith.constant 0 : index
      %c0_12 = arith.constant 0 : index
      %19 = vector.load %arg2[%c0_11, %c0_12] : memref<32x32xbf16, #tpu.memory_space<vmem>>, vector<32x32xbf16>
      %20 = arith.extf %19 : vector<32x32xbf16> to vector<32x32xf32>
      %cst_13 = arith.constant dense<0.000000e+00> : vector<32xf32>
      %21 = vector.multi_reduction <add>, %20, %cst_13 [1] : vector<32x32xf32> to vector<32xf32>
      %22 = vector.shape_cast %21 : vector<32xf32> to vector<32x1xf32>
      %cst_14 = arith.constant 3.200000e+01 : f32
      %23 = vector.broadcast %cst_14 : f32 to vector<32x1xf32>
      %24 = arith.divf %22, %23 : vector<32x1xf32>
      %25 = vector.broadcast %24 : vector<32x1xf32> to vector<32x32xf32>
      %26 = arith.subf %20, %25 : vector<32x32xf32>
      %27 = arith.mulf %26, %26 : vector<32x32xf32>
      %cst_15 = arith.constant dense<0.000000e+00> : vector<32xf32>
      %28 = vector.multi_reduction <add>, %27, %cst_15 [1] : vector<32x32xf32> to vector<32xf32>
      %29 = vector.shape_cast %28 : vector<32xf32> to vector<32x1xf32>
      %cst_16 = arith.constant 3.200000e+01 : f32
      %30 = vector.broadcast %cst_16 : f32 to vector<32x1xf32>
      %31 = arith.divf %29, %30 : vector<32x1xf32>
      %cst_17 = arith.constant 9.99999997E-7 : f32
      %32 = vector.broadcast %cst_17 : f32 to vector<32x1xf32>
      %33 = arith.addf %31, %32 : vector<32x1xf32>
      %34 = math.rsqrt %33 : vector<32x1xf32>
      %35 = vector.broadcast %34 : vector<32x1xf32> to vector<32x32xf32>
      %36 = arith.mulf %26, %35 : vector<32x32xf32>
      %c0_18 = arith.constant 0 : index
      %c0_19 = arith.constant 0 : index
      %37 = vector.load %arg3[%c0_18, %c0_19] : memref<1x32xf32, #tpu.memory_space<vmem>>, vector<1x32xf32>
      %38 = vector.broadcast %37 : vector<1x32xf32> to vector<32x32xf32>
      %39 = arith.mulf %36, %38 : vector<32x32xf32>
      %c0_20 = arith.constant 0 : index
      %c0_21 = arith.constant 0 : index
      %40 = vector.load %arg4[%c0_20, %c0_21] : memref<1x32xf32, #tpu.memory_space<vmem>>, vector<1x32xf32>
      %41 = vector.broadcast %40 : vector<1x32xf32> to vector<32x32xf32>
      %42 = arith.addf %39, %41 : vector<32x32xf32>
      %43 = arith.truncf %42 : vector<32x32xf32> to vector<32x32xbf16>
      %c0_22 = arith.constant 0 : index
      %c0_23 = arith.constant 0 : index
      %44 = vector.load %arg8[%c0_22, %c0_23] : memref<32x32xbf16, #tpu.memory_space<vmem>>, vector<32x32xbf16>
      tpu.vector_store %arg8[%c0_22, %c0_23], %43 {strides = array<i32>} : memref<32x32xbf16, #tpu.memory_space<vmem>>, vector<32x32xbf16>,
    } else {
    }
    %c0 = arith.constant 0 : index
    %c0_1 = arith.constant 0 : index
    %3 = vector.load %arg8[%c0, %c0_1] : memref<32x32xbf16, #tpu.memory_space<vmem>>, vector<32x32xbf16>
    %c0_2 = arith.constant 0 : index
    %c0_3 = arith.constant 0 : index
    %4 = vector.load %arg5[%c0_2, %c0_3] : memref<32x128xbf16, #tpu.memory_space<vmem>>, vector<32x128xbf16>
    %cst = arith.constant dense<0.000000e+00> : vector<32x128xf32>
    %5 = tpu.matmul %3, %4, %cst {dimension_numbers = #tpu.dot_dimension_numbers<[1], [0], [0], [1], [0, 0, 1, 1], [], []>} : vector<32x32xbf16>, vector<32x128xbf16>, vector<32x128xf32> -> vector<32x128xf32>
    %c0_4 = arith.constant 0 : index
    %c0_5 = arith.constant 0 : index
    %6 = vector.load %arg6[%c0_4, %c0_5] : memref<1x128xf32, #tpu.memory_space<vmem>>, vector<1x128xf32>
    %7 = vector.broadcast %6 : vector<1x128xf32> to vector<32x128xf32>
    %8 = arith.addf %5, %7 : vector<32x128xf32>
    %cst_6 = arith.constant 5.000000e-01 : f32
    %9 = vector.broadcast %cst_6 : f32 to vector<32x128xf32>
    %10 = arith.mulf %9, %8 : vector<32x128xf32>
    %cst_7 = arith.constant 0.707106769 : f32
    %11 = vector.broadcast %cst_7 : f32 to vector<32x128xf32>
    %12 = arith.mulf %8, %11 : vector<32x128xf32>
    %13 = math.erf %12 : vector<32x128xf32>
    %cst_8 = arith.constant 1.000000e+00 : f32
    %14 = vector.broadcast %cst_8 : f32 to vector<32x128xf32>
    %15 = arith.addf %14, %13 : vector<32x128xf32>
    %16 = arith.mulf %10, %15 : vector<32x128xf32>
    %17 = arith.truncf %16 : vector<32x128xf32> to vector<32x128xbf16>
    %c0_9 = arith.constant 0 : index
    %c0_10 = arith.constant 0 : index
    %18 = vector.load %arg7[%c0_9, %c0_10] : memref<32x128xbf16, #tpu.memory_space<vmem>>, vector<32x128xbf16>
    tpu.vector_store %arg7[%c0_9, %c0_10], %17 {strides = array<i32>} : memref<32x128xbf16, #tpu.memory_space<vmem>>, vector<32x128xbf16>,
    return
  }
  func.func @transform_0(%arg0: i32, %arg1: i32) -> (i32, i32) {
    %c0_i32 = arith.constant 0 : i32
    %c0_i32_0 = arith.constant 0 : i32
    return %arg0, %c0_i32 : i32, i32
  }
  func.func @transform_1(%arg0: i32, %arg1: i32) -> (i32, i32) {
    %c0_i32 = arith.constant 0 : i32
    %c0_i32_0 = arith.constant 0 : i32
    %c0_i32_1 = arith.constant 0 : i32
    return %c0_i32, %c0_i32_0 : i32, i32
  }
  func.func @transform_2(%arg0: i32, %arg1: i32) -> (i32, i32) {
    %c0_i32 = arith.constant 0 : i32
    %c0_i32_0 = arith.constant 0 : i32
    %c0_i32_1 = arith.constant 0 : i32
    return %c0_i32, %c0_i32_0 : i32, i32
  }
  func.func @transform_3(%arg0: i32, %arg1: i32) -> (i32, i32) {
    %c0_i32 = arith.constant 0 : i32
    %c0_i32_0 = arith.constant 0 : i32
    return %c0_i32, %arg1 : i32, i32
  }
  func.func @transform_4(%arg0: i32, %arg1: i32) -> (i32, i32) {
    %c0_i32 = arith.constant 0 : i32
    %c0_i32_0 = arith.constant 0 : i32
    return %c0_i32, %arg1 : i32, i32
  }
  func.func @transform_5(%arg0: i32, %arg1: i32) -> (i32, i32) {
    %c0_i32 = arith.constant 0 : i32
    return %arg0, %arg1 : i32, i32
  }
}

module attributes {stable_mosaic.version = 11 : i64} {
  func.func @_matmul_res_kernel(%arg0: i32, %arg1: i32, %arg2: i32, %arg3: memref<32x128xbf16, #tpu.memory_space<vmem>>, %arg4: memref<128x32xbf16, #tpu.memory_space<vmem>>, %arg5: memref<1x32xf32, #tpu.memory_space<vmem>>, %arg6: memref<32x32xbf16, #tpu.memory_space<vmem>>, %arg7: memref<32x32xbf16, #tpu.memory_space<vmem>>, %arg8: memref<32x32xf32, #tpu.memory_space<vmem>>) attributes {dimension_semantics = [#tpu.dimension_semantics<parallel>, #tpu.dimension_semantics<parallel>, #tpu.dimension_semantics<arbitrary>], iteration_bounds = array<i64: 1, 1, 1>, scalar_prefetch = 0 : i64, scratch_operands = 1 : i64, tpu.core_type = #tpu.core_type<tc>, window_params = [{transform_indices = @transform_0, window_bounds = array<i64: 32, 128>}, {transform_indices = @transform_1, window_bounds = array<i64: 128, 32>}, {transform_indices = @transform_2, window_bounds = array<i64: 1, 32>}, {transform_indices = @transform_3, window_bounds = array<i64: 32, 32>}, {transform_indices = @transform_4, window_bounds = array<i64: 32, 32>}]} {
    %c0_i32 = arith.constant 0 : i32
    %0 = arith.cmpi eq, %arg2, %c0_i32 : i32
    %1 = arith.extui %0 : i1 to i32
    %c0_i32_0 = arith.constant 0 : i32
    %2 = arith.cmpi ne, %1, %c0_i32_0 : i32
    scf.if %2 {
      %c0_10 = arith.constant 0 : index
      %c0_11 = arith.constant 0 : index
      %12 = vector.load %arg5[%c0_10, %c0_11] : memref<1x32xf32, #tpu.memory_space<vmem>>, vector<1x32xf32>
      %13 = vector.shape_cast %12 : vector<1x32xf32> to vector<1x32xf32>
      %14 = vector.broadcast %13 : vector<1x32xf32> to vector<32x32xf32>
      %c0_12 = arith.constant 0 : index
      %c0_13 = arith.constant 0 : index
      %15 = vector.load %arg8[%c0_12, %c0_13] : memref<32x32xf32, #tpu.memory_space<vmem>>, vector<32x32xf32>
      tpu.vector_store %arg8[%c0_12, %c0_13], %14 {strides = array<i32>} : memref<32x32xf32, #tpu.memory_space<vmem>>, vector<32x32xf32>,
    } else {
    }
    %c0 = arith.constant 0 : index
    %c0_1 = arith.constant 0 : index
    %3 = vector.load %arg8[%c0, %c0_1] : memref<32x32xf32, #tpu.memory_space<vmem>>, vector<32x32xf32>
    %c0_2 = arith.constant 0 : index
    %c0_3 = arith.constant 0 : index
    %4 = vector.load %arg3[%c0_2, %c0_3] : memref<32x128xbf16, #tpu.memory_space<vmem>>, vector<32x128xbf16>
    %c0_4 = arith.constant 0 : index
    %c0_5 = arith.constant 0 : index
    %5 = vector.load %arg4[%c0_4, %c0_5] : memref<128x32xbf16, #tpu.memory_space<vmem>>, vector<128x32xbf16>
    %cst = arith.constant dense<0.000000e+00> : vector<32x32xf32>
    %6 = tpu.matmul %4, %5, %cst {dimension_numbers = #tpu.dot_dimension_numbers<[1], [0], [0], [1], [0, 0, 1, 1], [], []>} : vector<32x128xbf16>, vector<128x32xbf16>, vector<32x32xf32> -> vector<32x32xf32>
    %7 = arith.addf %3, %6 : vector<32x32xf32>
    %c0_6 = arith.constant 0 : index
    %c0_7 = arith.constant 0 : index
    %8 = vector.load %arg8[%c0_6, %c0_7] : memref<32x32xf32, #tpu.memory_space<vmem>>, vector<32x32xf32>
    tpu.vector_store %arg8[%c0_6, %c0_7], %7 {strides = array<i32>} : memref<32x32xf32, #tpu.memory_space<vmem>>, vector<32x32xf32>,
    %c0_i32_8 = arith.constant 0 : i32
    %9 = arith.cmpi eq, %arg2, %c0_i32_8 : i32
    %10 = arith.extui %9 : i1 to i32
    %c0_i32_9 = arith.constant 0 : i32
    %11 = arith.cmpi ne, %10, %c0_i32_9 : i32
    scf.if %11 {
      %c0_10 = arith.constant 0 : index
      %c0_11 = arith.constant 0 : index
      %12 = vector.load %arg8[%c0_10, %c0_11] : memref<32x32xf32, #tpu.memory_space<vmem>>, vector<32x32xf32>
      %c0_12 = arith.constant 0 : index
      %c0_13 = arith.constant 0 : index
      %13 = vector.load %arg6[%c0_12, %c0_13] : memref<32x32xbf16, #tpu.memory_space<vmem>>, vector<32x32xbf16>
      %14 = arith.extf %13 : vector<32x32xbf16> to vector<32x32xf32>
      %15 = arith.addf %12, %14 : vector<32x32xf32>
      %16 = arith.truncf %15 : vector<32x32xf32> to vector<32x32xbf16>
      %c0_14 = arith.constant 0 : index
      %c0_15 = arith.constant 0 : index
      %17 = vector.load %arg7[%c0_14, %c0_15] : memref<32x32xbf16, #tpu.memory_space<vmem>>, vector<32x32xbf16>
      tpu.vector_store %arg7[%c0_14, %c0_15], %16 {strides = array<i32>} : memref<32x32xbf16, #tpu.memory_space<vmem>>, vector<32x32xbf16>,
    } else {
    }
    return
  }
  func.func @transform_0(%arg0: i32, %arg1: i32, %arg2: i32) -> (i32, i32) {
    %c0_i32 = arith.constant 0 : i32
    return %arg0, %arg2 : i32, i32
  }
  func.func @transform_1(%arg0: i32, %arg1: i32, %arg2: i32) -> (i32, i32) {
    %c0_i32 = arith.constant 0 : i32
    return %arg2, %arg1 : i32, i32
  }
  func.func @transform_2(%arg0: i32, %arg1: i32, %arg2: i32) -> (i32, i32) {
    %c0_i32 = arith.constant 0 : i32
    %c0_i32_0 = arith.constant 0 : i32
    return %c0_i32, %arg1 : i32, i32
  }
  func.func @transform_3(%arg0: i32, %arg1: i32, %arg2: i32) -> (i32, i32) {
    %c0_i32 = arith.constant 0 : i32
    return %arg0, %arg1 : i32, i32
  }
  func.func @transform_4(%arg0: i32, %arg1: i32, %arg2: i32) -> (i32, i32) {
    %c0_i32 = arith.constant 0 : i32
    return %arg0, %arg1 : i32, i32
  }
}

module attributes {stable_mosaic.version = 11 : i64} {
  func.func @_ln_matmul_kernel(%arg0: i32, %arg1: i32, %arg2: memref<2x32xbf16, #tpu.memory_space<vmem>>, %arg3: memref<1x32xf32, #tpu.memory_space<vmem>>, %arg4: memref<1x32xf32, #tpu.memory_space<vmem>>, %arg5: memref<32x128xbf16, #tpu.memory_space<vmem>>, %arg6: memref<1x128xf32, #tpu.memory_space<vmem>>, %arg7: memref<2x128xf32, #tpu.memory_space<vmem>>, %arg8: memref<2x32xbf16, #tpu.memory_space<vmem>>) attributes {dimension_semantics = [#tpu.dimension_semantics<parallel>, #tpu.dimension_semantics<arbitrary>], iteration_bounds = array<i64: 1, 1>, scalar_prefetch = 0 : i64, scratch_operands = 1 : i64, tpu.core_type = #tpu.core_type<tc>, window_params = [{transform_indices = @transform_0, window_bounds = array<i64: 2, 32>}, {pipeline_mode = #tpu.pipeline_mode<synchronous>, transform_indices = @transform_1, window_bounds = array<i64: 1, 32>}, {pipeline_mode = #tpu.pipeline_mode<synchronous>, transform_indices = @transform_2, window_bounds = array<i64: 1, 32>}, {transform_indices = @transform_3, window_bounds = array<i64: 32, 128>}, {transform_indices = @transform_4, window_bounds = array<i64: 1, 128>}, {transform_indices = @transform_5, window_bounds = array<i64: 2, 128>}]} {
    %c0_i32 = arith.constant 0 : i32
    %0 = arith.cmpi eq, %arg1, %c0_i32 : i32
    %1 = arith.extui %0 : i1 to i32
    %c0_i32_0 = arith.constant 0 : i32
    %2 = arith.cmpi ne, %1, %c0_i32_0 : i32
    scf.if %2 {
      %c0_8 = arith.constant 0 : index
      %c0_9 = arith.constant 0 : index
      %10 = vector.load %arg2[%c0_8, %c0_9] : memref<2x32xbf16, #tpu.memory_space<vmem>>, vector<2x32xbf16>
      %11 = arith.extf %10 : vector<2x32xbf16> to vector<2x32xf32>
      %cst_10 = arith.constant dense<0.000000e+00> : vector<2xf32>
      %12 = vector.multi_reduction <add>, %11, %cst_10 [1] : vector<2x32xf32> to vector<2xf32>
      %13 = vector.shape_cast %12 : vector<2xf32> to vector<2x1xf32>
      %cst_11 = arith.constant 3.200000e+01 : f32
      %14 = vector.broadcast %cst_11 : f32 to vector<2x1xf32>
      %15 = arith.divf %13, %14 : vector<2x1xf32>
      %16 = vector.broadcast %15 : vector<2x1xf32> to vector<2x32xf32>
      %17 = arith.subf %11, %16 : vector<2x32xf32>
      %18 = arith.mulf %17, %17 : vector<2x32xf32>
      %cst_12 = arith.constant dense<0.000000e+00> : vector<2xf32>
      %19 = vector.multi_reduction <add>, %18, %cst_12 [1] : vector<2x32xf32> to vector<2xf32>
      %20 = vector.shape_cast %19 : vector<2xf32> to vector<2x1xf32>
      %cst_13 = arith.constant 3.200000e+01 : f32
      %21 = vector.broadcast %cst_13 : f32 to vector<2x1xf32>
      %22 = arith.divf %20, %21 : vector<2x1xf32>
      %cst_14 = arith.constant 9.99999997E-7 : f32
      %23 = vector.broadcast %cst_14 : f32 to vector<2x1xf32>
      %24 = arith.addf %22, %23 : vector<2x1xf32>
      %25 = math.rsqrt %24 : vector<2x1xf32>
      %26 = vector.broadcast %25 : vector<2x1xf32> to vector<2x32xf32>
      %27 = arith.mulf %17, %26 : vector<2x32xf32>
      %c0_15 = arith.constant 0 : index
      %c0_16 = arith.constant 0 : index
      %28 = vector.load %arg3[%c0_15, %c0_16] : memref<1x32xf32, #tpu.memory_space<vmem>>, vector<1x32xf32>
      %29 = vector.broadcast %28 : vector<1x32xf32> to vector<2x32xf32>
      %30 = arith.mulf %27, %29 : vector<2x32xf32>
      %c0_17 = arith.constant 0 : index
      %c0_18 = arith.constant 0 : index
      %31 = vector.load %arg4[%c0_17, %c0_18] : memref<1x32xf32, #tpu.memory_space<vmem>>, vector<1x32xf32>
      %32 = vector.broadcast %31 : vector<1x32xf32> to vector<2x32xf32>
      %33 = arith.addf %30, %32 : vector<2x32xf32>
      %34 = arith.truncf %33 : vector<2x32xf32> to vector<2x32xbf16>
      %c0_19 = arith.constant 0 : index
      %c0_20 = arith.constant 0 : index
      %35 = vector.load %arg8[%c0_19, %c0_20] : memref<2x32xbf16, #tpu.memory_space<vmem>>, vector<2x32xbf16>
      tpu.vector_store %arg8[%c0_19, %c0_20], %34 {strides = array<i32>} : memref<2x32xbf16, #tpu.memory_space<vmem>>, vector<2x32xbf16>,
    } else {
    }
    %c0 = arith.constant 0 : index
    %c0_1 = arith.constant 0 : index
    %3 = vector.load %arg8[%c0, %c0_1] : memref<2x32xbf16, #tpu.memory_space<vmem>>, vector<2x32xbf16>
    %c0_2 = arith.constant 0 : index
    %c0_3 = arith.constant 0 : index
    %4 = vector.load %arg5[%c0_2, %c0_3] : memref<32x128xbf16, #tpu.memory_space<vmem>>, vector<32x128xbf16>
    %cst = arith.constant dense<0.000000e+00> : vector<2x128xf32>
    %5 = tpu.matmul %3, %4, %cst {dimension_numbers = #tpu.dot_dimension_numbers<[1], [0], [0], [1], [0, 0, 1, 1], [], []>} : vector<2x32xbf16>, vector<32x128xbf16>, vector<2x128xf32> -> vector<2x128xf32>
    %c0_4 = arith.constant 0 : index
    %c0_5 = arith.constant 0 : index
    %6 = vector.load %arg6[%c0_4, %c0_5] : memref<1x128xf32, #tpu.memory_space<vmem>>, vector<1x128xf32>
    %7 = vector.broadcast %6 : vector<1x128xf32> to vector<2x128xf32>
    %8 = arith.addf %5, %7 : vector<2x128xf32>
    %c0_6 = arith.constant 0 : index
    %c0_7 = arith.constant 0 : index
    %9 = vector.load %arg7[%c0_6, %c0_7] : memref<2x128xf32, #tpu.memory_space<vmem>>, vector<2x128xf32>
    tpu.vector_store %arg7[%c0_6, %c0_7], %8 {strides = array<i32>} : memref<2x128xf32, #tpu.memory_space<vmem>>, vector<2x128xf32>,
    return
  }
  func.func @transform_0(%arg0: i32, %arg1: i32) -> (i32, i32) {
    %c0_i32 = arith.constant 0 : i32
    %c0_i32_0 = arith.constant 0 : i32
    return %arg0, %c0_i32 : i32, i32
  }
  func.func @transform_1(%arg0: i32, %arg1: i32) -> (i32, i32) {
    %c0_i32 = arith.constant 0 : i32
    %c0_i32_0 = arith.constant 0 : i32
    %c0_i32_1 = arith.constant 0 : i32
    return %c0_i32, %c0_i32_0 : i32, i32
  }
  func.func @transform_2(%arg0: i32, %arg1: i32) -> (i32, i32) {
    %c0_i32 = arith.constant 0 : i32
    %c0_i32_0 = arith.constant 0 : i32
    %c0_i32_1 = arith.constant 0 : i32
    return %c0_i32, %c0_i32_0 : i32, i32
  }
  func.func @transform_3(%arg0: i32, %arg1: i32) -> (i32, i32) {
    %c0_i32 = arith.constant 0 : i32
    %c0_i32_0 = arith.constant 0 : i32
    return %c0_i32, %arg1 : i32, i32
  }
  func.func @transform_4(%arg0: i32, %arg1: i32) -> (i32, i32) {
    %c0_i32 = arith.constant 0 : i32
    %c0_i32_0 = arith.constant 0 : i32
    return %c0_i32, %arg1 : i32, i32
  }
  func.func @transform_5(%arg0: i32, %arg1: i32) -> (i32, i32) {
    %c0_i32 = arith.constant 0 : i32
    return %arg0, %arg1 : i32, i32
  }
}

</mosaic_0001>

<llo_original>
// kernel: vit_lora_forward.15
$region0: #{vit_lora_forward.15}
  #allocation0 [shape = 'u32[]', space=smem, size = 0x4, offset = 0x4, fixed_abs, tag = 'smem constant byte address 0x4 - core index']
  #allocation1 [shape = 'u32[144,128]{1,0:T(1,128)}', space=vmem, size = 0x12000, scoped, tag = 'internal scratch']
  #allocation2 [shape = 'f32[32,32]{1,0:T(8,128)}', space=vmem, size = 0x4000, scoped, tag = 'scratch operand']
  %s0 = inlined_call_operand.vmem [shape: bf16[32,32], index: 0, kind: input, shape index: {}]
  %s1 = inlined_call_operand.vmem [shape: bf16[32,32], index: 1, kind: input, shape index: {}]
  %s2 = inlined_call_operand.vmem [shape: f32[1,32], index: 2, kind: input, shape index: {}]
  %s3 = inlined_call_operand.vmem [shape: bf16[32,32], index: 3, kind: input, shape index: {}]
  %s4 = inlined_call_operand.vmem [shape: bf16[32,32], index: 4, kind: output, shape index: {}]
  %s5 = sld [smem:[#allocation0]]
  $region34: #{vit_lora_forward.15} parent=0
    _
  %s7 = ssub.s32 1, %s5
  %s8 = scalar_select 0, %s7, %s5
  // Predicated region
  $region2: #{vit_lora_forward.15} parent=0 // pred_check
    _
  $region3: #{vit_lora_forward.15} parent=0 // pred_check_branch
    %10 = sbr.rel (0) target = $region5
  $region4: #{vit_lora_forward.15} parent=0 // pred_region
    _
  $region5: #{vit_lora_forward.15} parent=0 // pred_fallthru
    _
  // Predicated region
  $region6: #{vit_lora_forward.15} parent=0 // pred_check
    _
  $region7: #{vit_lora_forward.15} parent=0 // pred_check_branch
    %12 = sbr.rel (0) target = $region9
  $region8: #{vit_lora_forward.15} parent=0 // pred_region
    _
  $region9: #{vit_lora_forward.15} parent=0 // pred_fallthru
    _
  // Predicated region
  $region10: #{vit_lora_forward.15} parent=0 // pred_check
    _
  $region11: #{vit_lora_forward.15} parent=0 // pred_check_branch
    %14 = sbr.rel (0) target = $region13
  $region12: #{vit_lora_forward.15} parent=0 // pred_region
    _
  $region13: #{vit_lora_forward.15} parent=0 // pred_fallthru
    _
  // Predicated region
  $region14: #{vit_lora_forward.15} parent=0 // pred_check
    _
  $region15: #{vit_lora_forward.15} parent=0 // pred_check_branch
    %16 = sbr.rel (0) target = $region17
  $region16: #{vit_lora_forward.15} parent=0 // pred_region
    _
  $region17: #{vit_lora_forward.15} parent=0 // pred_fallthru
    _
  %p18 = scmp.eq.s32.totalorder 0, 0
  // Predicated region
  $region18: #{vit_lora_forward.15} parent=0 // pred_check
    %p19 = pneg %p18
  $region19: #{vit_lora_forward.15} parent=0 // pred_check_branch
    %21 = sbr.rel (%p19) target = $region21
  $region20: #{vit_lora_forward.15} parent=0 // pred_region
    %v22 = vld [vmem:[%s2] sm:$0x1]
    %v24 = vlaneseq
    %v25 = vshrl.u32 %v24, 7
    %v26 = vsub.s32 0, %v25
    %v27 = vrot.slane %v22, %v26
    %vm29 = vcmask 261120
    %30 = vst.msk [vmem:[#allocation2] sm:$0xff] %vm29, %v27
    %31 = vst.msk [vmem:[#allocation2 + $0x8] sm:$0xff] %vm29, %v27
    %32 = vst.msk [vmem:[#allocation2 + $0x10] sm:$0xff] %vm29, %v27
    %33 = vst.msk [vmem:[#allocation2 + $0x18] sm:$0xff] %vm29, %v27
  $region21: #{vit_lora_forward.15} parent=0 // pred_fallthru
    _
  %v34 = vld [vmem:[#allocation2] sm:$0xff]
  %v35 = vld [vmem:[#allocation2 + $0x8] sm:$0xff]
  %v36 = vld [vmem:[#allocation2 + $0x10] sm:$0xff]
  %v37 = vld [vmem:[#allocation2 + $0x18] sm:$0xff]
  %v38 = vld [vmem:[%s0] sm:$0xf]
  %v39 = vld [vmem:[%s0 + $0x4] sm:$0xf]
  %v40 = vld [vmem:[%s0 + $0x8] sm:$0xf]
  %v41 = vld [vmem:[%s0 + $0xc] sm:$0xf]
  %v42 = vld [vmem:[%s1] sm:$0xf]
  %v43 = vld [vmem:[%s1 + $0x4] sm:$0xf]
  %v44 = vld [vmem:[%s1 + $0x8] sm:$0xf]
  %v45 = vld [vmem:[%s1 + $0xc] sm:$0xf]
  %v50 = vunpack.c.l.b16 %v38
  %v51 = vunpack.c.l.b16 %v39
  %v52 = vunpack.c.l.b16 %v40
  %v53 = vunpack.c.l.b16 %v41
  %v54 = vpack.c.b16 %v51, %v50
  %v55 = vpack.c.b16 %v53, %v52
  %v60 = vunpack.c.l.b16 %v42
  %v61 = vunpack.c.l.b16 %v43
  %v62 = vunpack.c.l.b16 %v44
  %v63 = vunpack.c.l.b16 %v45
  %v64 = vpack.c.b16 %v61, %v60
  %v65 = vpack.c.b16 %v63, %v62
  %vm68 = vcmask 261120
  %v70 = vsel %vm68, %v54, 0
  %v73 = vsel %vm68, %v55, 0
  %75 = vmatprep.subr.bf16.mxu0 0
  %76 = vmatpush1.bf16.msra.mxu0 0
  %77 = vmatprep.subr.bf16.mxu0 0
  %78 = vmatpush1.bf16.msra.mxu0 0
  %79 = vmatprep.subr.bf16.mxu0 0
  %80 = vmatpush1.bf16.msra.mxu0 0
  %81 = vmatprep.subr.bf16.mxu0 0
  %82 = vmatpush1.bf16.msra.mxu0 0
  %83 = vmatprep.subr.bf16.mxu0 0
  %84 = vmatpush1.bf16.msra.mxu0 0
  %85 = vmatprep.subr.bf16.mxu0 0
  %86 = vmatpush1.bf16.msra.mxu0 0
  %87 = vmatprep.subr.bf16.mxu0 0
  %88 = vmatpush1.bf16.msra.mxu0 %v65
  %89 = vmatprep.subr.bf16.mxu0 0
  %90 = vmatpush1.bf16.msra.mxu0 %v64
  %91 = vmatprep.subr.bf16.mxu0 0
  %92 = vmatpush2.bf16.msra.mxu0 0
  %93 = vmatprep.subr.bf16.mxu0 0
  %94 = vmatpush2.bf16.msra.mxu0 0
  %95 = vmatprep.subr.bf16.mxu0 0
  %96 = vmatpush2.bf16.msra.mxu0 0
  %97 = vmatprep.subr.bf16.mxu0 0
  %98 = vmatpush2.bf16.msra.mxu0 0
  %99 = vmatprep.subr.bf16.mxu0 0
  %100 = vmatpush2.bf16.msra.mxu0 0
  %101 = vmatprep.subr.bf16.mxu0 0
  %102 = vmatpush2.bf16.msra.mxu0 0
  %103 = vmatprep.subr.bf16.mxu0 0
  %104 = vmatpush2.bf16.msra.mxu0 0
  %105 = vmatprep.subr.bf16.mxu0 0
  %106 = vmatpush2.bf16.msra.mxu0 0
  %107 = vmatprep.mubr.bf16.mxu0 0
  %108 = vmatmul.mubr.bf16.gmra.mxu0 %v70
  %v109 = vpop.f32.mrf.mxu0
  %v110 = vadd.f32 0.0, %v109
  %v111 = vpop.f32.mrf.mxu0
  %v112 = vpop.f32.mrf.mxu0
  %v113 = vadd.f32 0.0, %v112
  %v114 = vpop.f32.mrf.mxu0
  %115 = vmatprep.mubr.bf16.mxu0 0
  %116 = vmatmul.mubr.bf16.gmra.mxu0 %v73
  %v117 = vpop.f32.mrf.mxu0
  %v118 = vadd.f32 0.0, %v117
  %v119 = vpop.f32.mrf.mxu0
  %v120 = vpop.f32.mrf.mxu0
  %v121 = vadd.f32 0.0, %v120
  %v122 = vpop.f32.mrf.mxu0
  %123 = vdwg.mxu0
  %v124 = vadd.f32 %v34, %v110
  %v125 = vadd.f32 %v35, %v113
  %v126 = vadd.f32 %v36, %v118
  %v127 = vadd.f32 %v37, %v121
  %128 = vst.msk [vmem:[#allocation2] sm:$0xff] %vm68, %v124
  %129 = vst.msk [vmem:[#allocation2 + $0x8] sm:$0xff] %vm68, %v125
  %130 = vst.msk [vmem:[#allocation2 + $0x10] sm:$0xff] %vm68, %v126
  %131 = vst.msk [vmem:[#allocation2 + $0x18] sm:$0xff] %vm68, %v127
  // Predicated region
  $region22: #{vit_lora_forward.15} parent=0 // pred_check
    %p132 = pneg %p18
  $region23: #{vit_lora_forward.15} parent=0 // pred_check_branch
    %134 = sbr.rel (%p132) target = $region25
  $region24: #{vit_lora_forward.15} parent=0 // pred_region
    %v135 = vld [vmem:[#allocation2] sm:$0xff]
    %v136 = vld [vmem:[#allocation2 + $0x8] sm:$0xff]
    %v137 = vld [vmem:[#allocation2 + $0x10] sm:$0xff]
    %v138 = vld [vmem:[#allocation2 + $0x18] sm:$0xff]
    %v139 = vld [vmem:[%s3] sm:$0xf]
    %v140 = vld [vmem:[%s3 + $0x4] sm:$0xf]
    %v141 = vld [vmem:[%s3 + $0x8] sm:$0xf]
    %v142 = vld [vmem:[%s3 + $0xc] sm:$0xf]
    %v143 = vunpack.c.l.bf16 %v139
    %v144 = vunpack.c.l.bf16 %v140
    %v145 = vunpack.c.l.bf16 %v141
    %v146 = vunpack.c.l.bf16 %v142
    %v147 = vadd.f32 %v135, %v143
    %v148 = vadd.f32 %v136, %v144
    %v149 = vadd.f32 %v137, %v145
    %v150 = vadd.f32 %v138, %v146
    %v151 = vpack.c.bf16 %v148, %v147
    %v152 = vpack.c.bf16 %v150, %v149
    %v155 = vunpack.c.l.b16 %v151
    %v156 = vunpack.c.h.b16 %v151
    %v157 = vunpack.c.l.b16 %v152
    %v158 = vunpack.c.h.b16 %v152
    %v159 = vpack.c.b16 %v155, %v155
    %v160 = vpack.c.b16 %v156, %v156
    %v161 = vpack.c.b16 %v157, %v157
    %v162 = vpack.c.b16 %v158, %v158
    %vm167 = vcmask 257024
    %168 = vst.msk [vmem:[%s4] sm:$0xf] %vm167, %v159
    %169 = vst.msk [vmem:[%s4 + $0x4] sm:$0xf] %vm167, %v160
    %170 = vst.msk [vmem:[%s4 + $0x8] sm:$0xf] %vm167, %v161
    %171 = vst.msk [vmem:[%s4 + $0xc] sm:$0xf] %vm167, %v162
  $region25: #{vit_lora_forward.15} parent=0 // pred_fallthru
    _
  // Predicated region
  $region26: #{vit_lora_forward.15} parent=0 // pred_check
    _
  $region27: #{vit_lora_forward.15} parent=0 // pred_check_branch
    %173 = sbr.rel (0) target = $region29
  $region28: #{vit_lora_forward.15} parent=0 // pred_region
    _
  $region29: #{vit_lora_forward.15} parent=0 // pred_fallthru
    _
  // Predicated region
  $region30: #{vit_lora_forward.15} parent=0 // pred_check
    _
  $region31: #{vit_lora_forward.15} parent=0 // pred_check_branch
    %175 = sbr.rel (0) target = $region33
  $region32: #{vit_lora_forward.15} parent=0 // pred_region
    _
  $region33: #{vit_lora_forward.15} parent=0 // pred_fallthru
    _

// kernel: vit_lora_forward.12
$region0: #{vit_lora_forward.12}
  #allocation0 [shape = 'u32[]', space=smem, size = 0x4, offset = 0x4, fixed_abs, tag = 'smem constant byte address 0x4 - core index']
  #allocation1 [shape = 'u32[144,128]{1,0:T(1,128)}', space=vmem, size = 0x12000, scoped, tag = 'internal scratch']
  #allocation2 [shape = 'f32[8,32]{1,0:T(8,128)}', space=vmem, size = 0x1000, scoped, tag = 'scratch operand']
  %s0 = inlined_call_operand.vmem [shape: bf16[8,192], index: 0, kind: input, shape index: {}]
  %s1 = inlined_call_operand.vmem [shape: bf16[192,32], index: 1, kind: input, shape index: {}]
  %s2 = inlined_call_operand.vmem [shape: f32[1,32], index: 2, kind: input, shape index: {}]
  %s3 = inlined_call_operand.vmem [shape: bf16[8,32], index: 3, kind: output, shape index: {}]
  %s4 = sld [smem:[#allocation0]]
  $region30: #{vit_lora_forward.12} parent=0
    _
  %s6 = ssub.s32 1, %s4
  %s7 = scalar_select 0, %s6, %s4
  // Predicated region
  $region2: #{vit_lora_forward.12} parent=0 // pred_check
    _
  $region3: #{vit_lora_forward.12} parent=0 // pred_check_branch
    %9 = sbr.rel (0) target = $region5
  $region4: #{vit_lora_forward.12} parent=0 // pred_region
    _
  $region5: #{vit_lora_forward.12} parent=0 // pred_fallthru
    _
  // Predicated region
  $region6: #{vit_lora_forward.12} parent=0 // pred_check
    _
  $region7: #{vit_lora_forward.12} parent=0 // pred_check_branch
    %11 = sbr.rel (0) target = $region9
  $region8: #{vit_lora_forward.12} parent=0 // pred_region
    _
  $region9: #{vit_lora_forward.12} parent=0 // pred_fallthru
    _
  // Predicated region
  $region10: #{vit_lora_forward.12} parent=0 // pred_check
    _
  $region11: #{vit_lora_forward.12} parent=0 // pred_check_branch
    %13 = sbr.rel (0) target = $region13
  $region12: #{vit_lora_forward.12} parent=0 // pred_region
    _
  $region13: #{vit_lora_forward.12} parent=0 // pred_fallthru
    _
  %p15 = scmp.eq.s32.totalorder 0, 0
  // Predicated region
  $region14: #{vit_lora_forward.12} parent=0 // pred_check
    %p16 = pneg %p15
  $region15: #{vit_lora_forward.12} parent=0 // pred_check_branch
    %18 = sbr.rel (%p16) target = $region17
  $region16: #{vit_lora_forward.12} parent=0 // pred_region
    %v19 = vld [vmem:[%s2] sm:$0x1]
    %v21 = vlaneseq
    %v22 = vshrl.u32 %v21, 7
    %v23 = vsub.s32 0, %v22
    %v24 = vrot.slane %v19, %v23
    %vm26 = vcmask 261120
    %27 = vst.msk [vmem:[#allocation2] sm:$0xff] %vm26, %v24
  $region17: #{vit_lora_forward.12} parent=0 // pred_fallthru
    _
  %v28 = vld [vmem:[#allocation2] sm:$0xff]
  %v29 = vld [vmem:[%s0] sm:$0xff]
  %v30 = vld [vmem:[%s1] sm:$0xf]
  %v31 = vld [vmem:[%s1 + $0x4] sm:$0xf]
  %v32 = vld [vmem:[%s1 + $0x8] sm:$0xf]
  %v33 = vld [vmem:[%s1 + $0xc] sm:$0xf]
  %v34 = vld [vmem:[%s1 + $0x10] sm:$0xf]
  %v35 = vld [vmem:[%s1 + $0x14] sm:$0xf]
  %v36 = vld [vmem:[%s1 + $0x18] sm:$0xf]
  %v37 = vld [vmem:[%s1 + $0x1c] sm:$0xf]
  %v38 = vld [vmem:[%s1 + $0x20] sm:$0xf]
  %v39 = vld [vmem:[%s1 + $0x24] sm:$0xf]
  %v40 = vld [vmem:[%s1 + $0x28] sm:$0xf]
  %v41 = vld [vmem:[%s1 + $0x2c] sm:$0xf]
  %v42 = vld [vmem:[%s1 + $0x30] sm:$0xf]
  %v43 = vld [vmem:[%s1 + $0x34] sm:$0xf]
  %v44 = vld [vmem:[%s1 + $0x38] sm:$0xf]
  %v45 = vld [vmem:[%s1 + $0x3c] sm:$0xf]
  %v46 = vld [vmem:[%s1 + $0x40] sm:$0xf]
  %v47 = vld [vmem:[%s1 + $0x44] sm:$0xf]
  %v48 = vld [vmem:[%s1 + $0x48] sm:$0xf]
  %v49 = vld [vmem:[%s1 + $0x4c] sm:$0xf]
  %v50 = vld [vmem:[%s1 + $0x50] sm:$0xf]
  %v51 = vld [vmem:[%s1 + $0x54] sm:$0xf]
  %v52 = vld [vmem:[%s1 + $0x58] sm:$0xf]
  %v53 = vld [vmem:[%s1 + $0x5c] sm:$0xf]
  %v55 = vunpack.c.l.b16 %v29
  %v56 = vunpack.c.h.b16 %v29
  %v57 = vpack.c.b16 %v55, %v55
  %v58 = vpack.c.b16 %v56, %v56
  %v84 = vunpack.c.l.b16 %v30
  %v85 = vunpack.c.l.b16 %v31
  %v86 = vunpack.c.l.b16 %v32
  %v87 = vunpack.c.l.b16 %v33
  %v88 = vunpack.c.l.b16 %v34
  %v89 = vunpack.c.l.b16 %v35
  %v90 = vunpack.c.l.b16 %v36
  %v91 = vunpack.c.l.b16 %v37
  %v92 = vunpack.c.l.b16 %v38
  %v93 = vunpack.c.l.b16 %v39
  %v94 = vunpack.c.l.b16 %v40
  %v95 = vunpack.c.l.b16 %v41
  %v96 = vunpack.c.l.b16 %v42
  %v97 = vunpack.c.l.b16 %v43
  %v98 = vunpack.c.l.b16 %v44
  %v99 = vunpack.c.l.b16 %v45
  %v100 = vunpack.c.l.b16 %v46
  %v101 = vunpack.c.l.b16 %v47
  %v102 = vunpack.c.l.b16 %v48
  %v103 = vunpack.c.l.b16 %v49
  %v104 = vunpack.c.l.b16 %v50
  %v105 = vunpack.c.l.b16 %v51
  %v106 = vunpack.c.l.b16 %v52
  %v107 = vunpack.c.l.b16 %v53
  %v108 = vpack.c.b16 %v85, %v84
  %v109 = vpack.c.b16 %v87, %v86
  %v110 = vpack.c.b16 %v89, %v88
  %v111 = vpack.c.b16 %v91, %v90
  %v112 = vpack.c.b16 %v93, %v92
  %v113 = vpack.c.b16 %v95, %v94
  %v114 = vpack.c.b16 %v97, %v96
  %v115 = vpack.c.b16 %v99, %v98
  %v116 = vpack.c.b16 %v101, %v100
  %v117 = vpack.c.b16 %v103, %v102
  %v118 = vpack.c.b16 %v105, %v104
  %v119 = vpack.c.b16 %v107, %v106
  %vm132 = vcmask 523264
  %v134 = vsel %vm132, %v58, 0
  %136 = vmatprep.subr.bf16.mxu0 0
  %137 = vmatpush1.bf16.msra.mxu0 %v115
  %138 = vmatprep.subr.bf16.mxu0 0
  %139 = vmatpush1.bf16.msra.mxu0 %v114
  %140 = vmatprep.subr.bf16.mxu0 0
  %141 = vmatpush1.bf16.msra.mxu0 %v113
  %142 = vmatprep.subr.bf16.mxu0 0
  %143 = vmatpush1.bf16.msra.mxu0 %v112
  %144 = vmatprep.subr.bf16.mxu0 0
  %145 = vmatpush1.bf16.msra.mxu0 %v111
  %146 = vmatprep.subr.bf16.mxu0 0
  %147 = vmatpush1.bf16.msra.mxu0 %v110
  %148 = vmatprep.subr.bf16.mxu0 0
  %149 = vmatpush1.bf16.msra.mxu0 %v109
  %150 = vmatprep.subr.bf16.mxu0 0
  %151 = vmatpush1.bf16.msra.mxu0 %v108
  %152 = vmatprep.subr.bf16.mxu0 0
  %153 = vmatpush2.bf16.msra.mxu0 0
  %154 = vmatprep.subr.bf16.mxu0 0
  %155 = vmatpush2.bf16.msra.mxu0 0
  %156 = vmatprep.subr.bf16.mxu0 0
  %157 = vmatpush2.bf16.msra.mxu0 0
  %158 = vmatprep.subr.bf16.mxu0 0
  %159 = vmatpush2.bf16.msra.mxu0 0
  %160 = vmatprep.subr.bf16.mxu0 0
  %161 = vmatpush2.bf16.msra.mxu0 %v119
  %162 = vmatprep.subr.bf16.mxu0 0
  %163 = vmatpush2.bf16.msra.mxu0 %v118
  %164 = vmatprep.subr.bf16.mxu0 0
  %165 = vmatpush2.bf16.msra.mxu0 %v117
  %166 = vmatprep.subr.bf16.mxu0 0
  %167 = vmatpush2.bf16.msra.mxu0 %v116
  %168 = vmatprep.mubr.bf16.mxu0 %v134
  %169 = vmatmul.mubr.bf16.gmra.mxu0 %v57
  %v170 = vpop.f32.mrf.mxu0
  %v171 = vadd.f32 0.0, %v170
  %v172 = vpop.f32.mrf.mxu0
  %v173 = vpop.f32.mrf.mxu0
  %v174 = vpop.f32.mrf.mxu0
  %175 = vdwg.mxu0
  %v176 = vadd.f32 %v28, %v171
  %vm177 = vcmask 261120
  %178 = vst.msk [vmem:[#allocation2] sm:$0xff] %vm177, %v176
  // Predicated region
  $region18: #{vit_lora_forward.12} parent=0 // pred_check
    %p179 = pneg %p15
  $region19: #{vit_lora_forward.12} parent=0 // pred_check_branch
    %181 = sbr.rel (%p179) target = $region21
  $region20: #{vit_lora_forward.12} parent=0 // pred_region
    %v182 = vld [vmem:[#allocation2] sm:$0xff]
    %v183 = vpack.c.bf16 %v182, %v182
    %vm184 = vcmask 257024
    %185 = vst.msk [vmem:[%s3] sm:$0xf] %vm184, %v183
  $region21: #{vit_lora_forward.12} parent=0 // pred_fallthru
    _
  // Predicated region
  $region22: #{vit_lora_forward.12} parent=0 // pred_check
    _
  $region23: #{vit_lora_forward.12} parent=0 // pred_check_branch
    %187 = sbr.rel (0) target = $region25
  $region24: #{vit_lora_forward.12} parent=0 // pred_region
    _
  $region25: #{vit_lora_forward.12} parent=0 // pred_fallthru
    _
  // Predicated region
  $region26: #{vit_lora_forward.12} parent=0 // pred_check
    _
  $region27: #{vit_lora_forward.12} parent=0 // pred_check_branch
    %189 = sbr.rel (0) target = $region29
  $region28: #{vit_lora_forward.12} parent=0 // pred_region
    _
  $region29: #{vit_lora_forward.12} parent=0 // pred_fallthru
    _

// kernel: vit_lora_forward.13
$region0: #{vit_lora_forward.13}
  #allocation0 [shape = 'u32[]', space=smem, size = 0x4, offset = 0x4, fixed_abs, tag = 'smem constant byte address 0x4 - core index']
  #allocation1 [shape = 'u32[144,128]{1,0:T(1,128)}', space=vmem, size = 0x12000, scoped, tag = 'internal scratch']
  #allocation2 [shape = 'bf16[32,32]{1,0:T(8,128)(2,1)}', space=vmem, size = 0x2000, scoped, tag = 'scratch operand']
  %s0 = inlined_call_operand.vmem [shape: bf16[32,32], index: 0, kind: input, shape index: {}]
  %s1 = inlined_call_operand.vmem [shape: f32[1,32], index: 1, kind: input, shape index: {}]
  %s2 = inlined_call_operand.vmem [shape: f32[1,32], index: 2, kind: input, shape index: {}]
  %s3 = inlined_call_operand.vmem [shape: bf16[32,96], index: 3, kind: input, shape index: {}]
  %s4 = inlined_call_operand.vmem [shape: f32[1,96], index: 4, kind: input, shape index: {}]
  %s5 = inlined_call_operand.vmem [shape: bf16[32,96], index: 5, kind: output, shape index: {}]
  %s6 = sld [smem:[#allocation0]]
  $region34: #{vit_lora_forward.13} parent=0
    _
  %s8 = ssub.s32 1, %s6
  %s9 = scalar_select 0, %s8, %s6
  // Predicated region
  $region2: #{vit_lora_forward.13} parent=0 // pred_check
    _
  $region3: #{vit_lora_forward.13} parent=0 // pred_check_branch
    %11 = sbr.rel (0) target = $region5
  $region4: #{vit_lora_forward.13} parent=0 // pred_region
    _
  $region5: #{vit_lora_forward.13} parent=0 // pred_fallthru
    _
  // Predicated region
  $region6: #{vit_lora_forward.13} parent=0 // pred_check
    _
  $region7: #{vit_lora_forward.13} parent=0 // pred_check_branch
    %13 = sbr.rel (0) target = $region9
  $region8: #{vit_lora_forward.13} parent=0 // pred_region
    _
  $region9: #{vit_lora_forward.13} parent=0 // pred_fallthru
    _
  // Predicated region
  $region10: #{vit_lora_forward.13} parent=0 // pred_check
    _
  $region11: #{vit_lora_forward.13} parent=0 // pred_check_branch
    %15 = sbr.rel (0) target = $region13
  $region12: #{vit_lora_forward.13} parent=0 // pred_region
    _
  $region13: #{vit_lora_forward.13} parent=0 // pred_fallthru
    _
  // Predicated region
  $region14: #{vit_lora_forward.13} parent=0 // pred_check
    _
  $region15: #{vit_lora_forward.13} parent=0 // pred_check_branch
    %17 = sbr.rel (0) target = $region17
  $region16: #{vit_lora_forward.13} parent=0 // pred_region
    _
  $region17: #{vit_lora_forward.13} parent=0 // pred_fallthru
    _
  // Predicated region
  $region18: #{vit_lora_forward.13} parent=0 // pred_check
    _
  $region19: #{vit_lora_forward.13} parent=0 // pred_check_branch
    %19 = sbr.rel (0) target = $region21
  $region20: #{vit_lora_forward.13} parent=0 // pred_region
    _
  $region21: #{vit_lora_forward.13} parent=0 // pred_fallthru
    _
  %p21 = scmp.eq.s32.totalorder 0, 0
  // Predicated region
  $region22: #{vit_lora_forward.13} parent=0 // pred_check
    %p22 = pneg %p21
  $region23: #{vit_lora_forward.13} parent=0 // pred_check_branch
    %24 = sbr.rel (%p22) target = $region25
  $region24: #{vit_lora_forward.13} parent=0 // pred_region
    %v25 = vld [vmem:[%s0] sm:$0xf]
    %v26 = vld [vmem:[%s0 + $0x4] sm:$0xf]
    %v27 = vld [vmem:[%s0 + $0x8] sm:$0xf]
    %v28 = vld [vmem:[%s0 + $0xc] sm:$0xf]
    %v29 = vunpack.c.l.bf16 %v25
    %v30 = vunpack.c.l.bf16 %v26
    %v31 = vunpack.c.l.bf16 %v27
    %v32 = vunpack.c.l.bf16 %v28
    %vm33 = vcmask 261120
    %v34 = vsel %vm33, %v29, 0.0
    %35 = vadd.xlane.f32.xlu0 %v34
    %v36 = vpop.xlane.xlu0 %35
    %v37 = vsel %vm33, %v30, 0.0
    %38 = vadd.xlane.f32.xlu0 %v37
    %v39 = vpop.xlane.xlu0 %38
    %v40 = vsel %vm33, %v31, 0.0
    %41 = vadd.xlane.f32.xlu0 %v40
    %v42 = vpop.xlane.xlu0 %41
    %v43 = vsel %vm33, %v32, 0.0
    %44 = vadd.xlane.f32.xlu0 %v43
    %v45 = vpop.xlane.xlu0 %44
    %v46 = vrcp.pop 32.0
    %v47 = vmul.f32 %v36, %v46
    %v48 = vmul.f32 %v39, %v46
    %v49 = vmul.f32 %v42, %v46
    %v50 = vmul.f32 %v45, %v46
    %v51 = vsub.f32 %v29, %v47
    %v52 = vsub.f32 %v30, %v48
    %v53 = vsub.f32 %v31, %v49
    %v54 = vsub.f32 %v32, %v50
    %v55 = vmul.f32 %v51, %v51
    %v56 = vmul.f32 %v52, %v52
    %v57 = vmul.f32 %v53, %v53
    %v58 = vmul.f32 %v54, %v54
    %v59 = vsel %vm33, %v55, 0.0
    %60 = vadd.xlane.f32.xlu0 %v59
    %v61 = vpop.xlane.xlu0 %60
    %v62 = vsel %vm33, %v56, 0.0
    %63 = vadd.xlane.f32.xlu0 %v62
    %v64 = vpop.xlane.xlu0 %63
    %v65 = vsel %vm33, %v57, 0.0
    %66 = vadd.xlane.f32.xlu0 %v65
    %v67 = vpop.xlane.xlu0 %66
    %v68 = vsel %vm33, %v58, 0.0
    %69 = vadd.xlane.f32.xlu0 %v68
    %v70 = vpop.xlane.xlu0 %69
    %v71 = vmul.f32 %v61, %v46
    %v72 = vmul.f32 %v64, %v46
    %v73 = vmul.f32 %v67, %v46
    %v74 = vmul.f32 %v70, %v46
    %v75 = vadd.f32 %v71, 1e-06
    %v76 = vadd.f32 %v72, 1e-06
    %v77 = vadd.f32 %v73, 1e-06
    %v78 = vadd.f32 %v74, 1e-06
    %v79 = vrsqrt.pop %v75
    %v80 = vrsqrt.pop %v76
    %v81 = vrsqrt.pop %v77
    %v82 = vrsqrt.pop %v78
    %v83 = vmul.f32 %v51, %v79
    %v84 = vmul.f32 %v52, %v80
    %v85 = vmul.f32 %v53, %v81
    %v86 = vmul.f32 %v54, %v82
    %v87 = vld [vmem:[%s1] sm:$0x1]
    %v89 = vlaneseq
    %v90 = vshrl.u32 %v89, 7
    %v91 = vsub.s32 0, %v90
    %v92 = vrot.slane %v87, %v91
    %v94 = vmul.f32 %v83, %v92
    %v95 = vmul.f32 %v84, %v92
    %v96 = vmul.f32 %v85, %v92
    %v97 = vmul.f32 %v86, %v92
    %v98 = vld [vmem:[%s2] sm:$0x1]
    %v100 = vlaneseq
    %v101 = vshrl.u32 %v100, 7
    %v102 = vsub.s32 0, %v101
    %v103 = vrot.slane %v98, %v102
    %v105 = vadd.f32 %v94, %v103
    %v106 = vadd.f32 %v95, %v103
    %v107 = vadd.f32 %v96, %v103
    %v108 = vadd.f32 %v97, %v103
    %v109 = vpack.c.bf16 %v106, %v105
    %v110 = vpack.c.bf16 %v108, %v107
    %v113 = vunpack.c.l.b16 %v109
    %v114 = vunpack.c.h.b16 %v109
    %v115 = vunpack.c.l.b16 %v110
    %v116 = vunpack.c.h.b16 %v110
    %v117 = vpack.c.b16 %v113, %v113
    %v118 = vpack.c.b16 %v114, %v114
    %v119 = vpack.c.b16 %v115, %v115
    %v120 = vpack.c.b16 %v116, %v116
    %vm125 = vcmask 257024
    %126 = vst.msk [vmem:[#allocation2] sm:$0xf] %vm125, %v117
    %127 = vst.msk [vmem:[#allocation2 + $0x4] sm:$0xf] %vm125, %v118
    %128 = vst.msk [vmem:[#allocation2 + $0x8] sm:$0xf] %vm125, %v119
    %129 = vst.msk [vmem:[#allocation2 + $0xc] sm:$0xf] %vm125, %v120
  $region25: #{vit_lora_forward.13} parent=0 // pred_fallthru
    _
  %v130 = vld [vmem:[#allocation2] sm:$0xf]
  %v131 = vld [vmem:[#allocation2 + $0x4] sm:$0xf]
  %v132 = vld [vmem:[#allocation2 + $0x8] sm:$0xf]
  %v133 = vld [vmem:[#allocation2 + $0xc] sm:$0xf]
  %v134 = vld [vmem:[%s3] sm:$0xf]
  %v135 = vld [vmem:[%s3 + $0x4] sm:$0xf]
  %v136 = vld [vmem:[%s3 + $0x8] sm:$0xf]
  %v137 = vld [vmem:[%s3 + $0xc] sm:$0xf]
  %v138 = vld [vmem:[%s4] sm:$0x1]
  %v140 = vlaneseq
  %v141 = vshrl.u32 %v140, 7
  %v142 = vsub.s32 0, %v141
  %v143 = vrot.slane %v138, %v142
  %v149 = vunpack.c.l.b16 %v130
  %v150 = vunpack.c.l.b16 %v131
  %v151 = vunpack.c.l.b16 %v132
  %v152 = vunpack.c.l.b16 %v133
  %v153 = vpack.c.b16 %v150, %v149
  %v154 = vpack.c.b16 %v152, %v151
  %v159 = vunpack.c.l.b16 %v134
  %v160 = vunpack.c.l.b16 %v135
  %v161 = vunpack.c.l.b16 %v136
  %v162 = vunpack.c.l.b16 %v137
  %v163 = vpack.c.b16 %v160, %v159
  %v164 = vpack.c.b16 %v162, %v161
  %vm167 = vcmask 261120
  %v169 = vsel %vm167, %v153, 0
  %v172 = vsel %vm167, %v154, 0
  %174 = vmatprep.subr.bf16.mxu0 0
  %175 = vmatpush1.bf16.msra.mxu0 0
  %176 = vmatprep.subr.bf16.mxu0 0
  %177 = vmatpush1.bf16.msra.mxu0 0
  %178 = vmatprep.subr.bf16.mxu0 0
  %179 = vmatpush1.bf16.msra.mxu0 0
  %180 = vmatprep.subr.bf16.mxu0 0
  %181 = vmatpush1.bf16.msra.mxu0 0
  %182 = vmatprep.subr.bf16.mxu0 0
  %183 = vmatpush1.bf16.msra.mxu0 0
  %184 = vmatprep.subr.bf16.mxu0 0
  %185 = vmatpush1.bf16.msra.mxu0 0
  %186 = vmatprep.subr.bf16.mxu0 0
  %187 = vmatpush1.bf16.msra.mxu0 %v164
  %188 = vmatprep.subr.bf16.mxu0 0
  %189 = vmatpush1.bf16.msra.mxu0 %v163
  %190 = vmatprep.subr.bf16.mxu0 0
  %191 = vmatpush2.bf16.msra.mxu0 0
  %192 = vmatprep.subr.bf16.mxu0 0
  %193 = vmatpush2.bf16.msra.mxu0 0
  %194 = vmatprep.subr.bf16.mxu0 0
  %195 = vmatpush2.bf16.msra.mxu0 0
  %196 = vmatprep.subr.bf16.mxu0 0
  %197 = vmatpush2.bf16.msra.mxu0 0
  %198 = vmatprep.subr.bf16.mxu0 0
  %199 = vmatpush2.bf16.msra.mxu0 0
  %200 = vmatprep.subr.bf16.mxu0 0
  %201 = vmatpush2.bf16.msra.mxu0 0
  %202 = vmatprep.subr.bf16.mxu0 0
  %203 = vmatpush2.bf16.msra.mxu0 0
  %204 = vmatprep.subr.bf16.mxu0 0
  %205 = vmatpush2.bf16.msra.mxu0 0
  %206 = vmatprep.mubr.bf16.mxu0 0
  %207 = vmatmul.mubr.bf16.gmra.mxu0 %v169
  %v208 = vpop.f32.mrf.mxu0
  %v209 = vadd.f32 %v143, %v208
  %v210 = vpop.f32.mrf.mxu0
  %v211 = vpop.f32.mrf.mxu0
  %v212 = vadd.f32 %v143, %v211
  %v213 = vpop.f32.mrf.mxu0
  %214 = vmatprep.mubr.bf16.mxu0 0
  %215 = vmatmul.mubr.bf16.gmra.mxu0 %v172
  %v216 = vpop.f32.mrf.mxu0
  %v217 = vadd.f32 %v143, %v216
  %v218 = vpop.f32.mrf.mxu0
  %v219 = vpop.f32.mrf.mxu0
  %v220 = vadd.f32 %v143, %v219
  %v221 = vpop.f32.mrf.mxu0
  %222 = vdwg.mxu0
  %v223 = vpack.c.bf16 %v212, %v209
  %v224 = vpack.c.bf16 %v220, %v217
  %v227 = vunpack.c.l.b16 %v223
  %v228 = vunpack.c.h.b16 %v223
  %v229 = vunpack.c.l.b16 %v224
  %v230 = vunpack.c.h.b16 %v224
  %v231 = vpack.c.b16 %v227, %v227
  %v232 = vpack.c.b16 %v228, %v228
  %v233 = vpack.c.b16 %v229, %v229
  %v234 = vpack.c.b16 %v230, %v230
  %vm239 = vcmask 781312
  %240 = vst.msk [vmem:[%s5] sm:$0xf] %vm239, %v231
  %241 = vst.msk [vmem:[%s5 + $0x4] sm:$0xf] %vm239, %v232
  %242 = vst.msk [vmem:[%s5 + $0x8] sm:$0xf] %vm239, %v233
  %243 = vst.msk [vmem:[%s5 + $0xc] sm:$0xf] %vm239, %v234
  // Predicated region
  $region26: #{vit_lora_forward.13} parent=0 // pred_check
    _
  $region27: #{vit_lora_forward.13} parent=0 // pred_check_branch
    %245 = sbr.rel (0) target = $region29
  $region28: #{vit_lora_forward.13} parent=0 // pred_region
    _
  $region29: #{vit_lora_forward.13} parent=0 // pred_fallthru
    _
  // Predicated region
  $region30: #{vit_lora_forward.13} parent=0 // pred_check
    _
  $region31: #{vit_lora_forward.13} parent=0 // pred_check_branch
    %247 = sbr.rel (0) target = $region33
  $region32: #{vit_lora_forward.13} parent=0 // pred_region
    _
  $region33: #{vit_lora_forward.13} parent=0 // pred_fallthru
    _

// kernel: vit_lora_forward.14
$region0: #{vit_lora_forward.14}
  #allocation0 [shape = 'u32[]', space=smem, size = 0x4, offset = 0x4, fixed_abs, tag = 'smem constant byte address 0x4 - core index']
  #allocation1 [shape = 'u32[144,128]{1,0:T(1,128)}', space=vmem, size = 0x12000, scoped, tag = 'internal scratch']
  %s0 = inlined_call_operand.vmem [shape: bf16[2,16,96], index: 0, kind: input, shape index: {}]
  %s1 = inlined_call_operand.vmem [shape: bf16[2,16,32], index: 1, kind: output, shape index: {}]
  %s2 = sld [smem:[#allocation0]]
  $region37: #{vit_lora_forward.14} parent=0
    _
  %s4 = ssub.s32 1, %s2
  %s5 = scalar_select 0, %s4, %s2
  loop: start=0, step=1, limit=4
  $region2: #{vit_lora_forward.14} parent=0 // loop_pre_header
    _
  $region3: #{vit_lora_forward.14} parent=0 // loop_header
    %s7 = sphi 0, %s11
    %p8 = scmp.ge.s32.totalorder %s7, 4
    %s17 = sphi 0, %s19
    %s20 = sphi 0, %s17
    %s21 = sphi 0, %s20
    %s37 = sphi 0, %s21
    %s43 = sphi 0, %s45
    %s46 = sphi 0, %s43
    %s47 = sphi 0, %s46
    %s63 = sphi 0, %s47
  $region4: #{vit_lora_forward.14} parent=0 // loop_header_branch
    %10 = sbr.rel (%p8) target = $region8
  $region5: #{vit_lora_forward.14} parent=0 // loop_body
    %s12 = ssub.s32 %s7, 1
    %s13 = ssub.s32 %s7, 2
    %s14 = sadd.s32 %s7, 1
    %s15 = ssub.s32 %s7, %s14
    %p16 = scmp.eq.s32.totalorder %s15, 0
    %s18 = sadd.s32 %s17, 1
    %s19 = scalar_select %p16, %s17, %s18
    %p22 = pneg %p16
    %p23 = scmp.eq.s32.totalorder %s7, 1
    %p24 = por %p22, %p23
    %p25 = scmp.ne.s32.totalorder %s17, %s20
    %p26 = scmp.eq.s32.totalorder %s7, 0
    %p27 = por %p25, %p26
    %p28 = scmp.ne.s32.totalorder %s17, %s20
    %p29 = scmp.eq.s32.totalorder %s12, 1
    %p30 = por %p28, %p29
    %p31 = scmp.ne.s32.totalorder %s20, %s21
    %p32 = scmp.eq.s32.totalorder %s12, 0
    %p33 = por %p31, %p32
    %p34 = scmp.ne.s32.totalorder %s20, %s21
    %p35 = scmp.eq.s32.totalorder %s13, 1
    %p36 = por %p34, %p35
    %p38 = scmp.ne.s32.totalorder %s21, %s37
    %p39 = scmp.eq.s32.totalorder %s13, 0
    %p40 = por %p38, %p39
    %s41 = ssub.s32 %s7, %s14
    %p42 = scmp.eq.s32.totalorder %s41, 0
    %s44 = sadd.s32 %s43, 1
    %s45 = scalar_select %p42, %s43, %s44
    %p48 = pneg %p42
    %p49 = scmp.eq.s32.totalorder %s7, 1
    %p50 = por %p48, %p49
    %p51 = scmp.ne.s32.totalorder %s43, %s46
    %p52 = scmp.eq.s32.totalorder %s7, 0
    %p53 = por %p51, %p52
    %p54 = scmp.ne.s32.totalorder %s43, %s46
    %p55 = scmp.eq.s32.totalorder %s12, 1
    %p56 = por %p54, %p55
    %p57 = scmp.ne.s32.totalorder %s46, %s47
    %p58 = scmp.eq.s32.totalorder %s12, 0
    %p59 = por %p57, %p58
    %p60 = scmp.ne.s32.totalorder %s46, %s47
    %p61 = scmp.eq.s32.totalorder %s13, 1
    %p62 = por %p60, %p61
    %p64 = scmp.ne.s32.totalorder %s47, %s63
    %p65 = scmp.eq.s32.totalorder %s13, 0
    %p66 = por %p64, %p65
    %p67 = scmp.le.s32.totalorder 1, %s7
    %p68 = scmp.lt.s32.totalorder %s7, 3
    %p69 = pnand %p67, %p68
    %p70 = pneg %p69
    // Predicated region
    $region9: #{vit_lora_forward.14} parent=5 // pred_check
      _
    $region10: #{vit_lora_forward.14} parent=5 // pred_check_branch
      %72 = sbr.rel (%p69) target = $region12
    $region11: #{vit_lora_forward.14} parent=5 // pred_region
      %s73 = ssub.s32 %s7, 1
    $region12: #{vit_lora_forward.14} parent=5 // pred_fallthru
      _
    %p74 = scmp.lt.s32.totalorder %s7, 2
    // Predicated region
    $region13: #{vit_lora_forward.14} parent=5 // pred_check
      %p75 = pneg %p74
    $region14: #{vit_lora_forward.14} parent=5 // pred_check_branch
      %77 = sbr.rel (%p75) target = $region16
    $region15: #{vit_lora_forward.14} parent=5 // pred_region
      // Predicated region
      $region17: #{vit_lora_forward.14} parent=15 // pred_check
        %p78 = pneg %p27
      $region18: #{vit_lora_forward.14} parent=15 // pred_check_branch
        %80 = sbr.rel (%p78) target = $region20
      $region19: #{vit_lora_forward.14} parent=15 // pred_region
        %p81 = scmp.lt.s32.totalorder %s7, 1
        %s82 = scalar_select %p81, %s7, 1
        %s83 = smul.addr %s82, 2
        %s84 = smul.addr %s83, 4
        %s85 = scalar_lea.vmem %s0, %s84
      $region20: #{vit_lora_forward.14} parent=15 // pred_fallthru
        _
    $region16: #{vit_lora_forward.14} parent=5 // pred_fallthru
      _
    %p86 = scmp.le.s32.totalorder 1, %s7
    %p87 = scmp.lt.s32.totalorder %s7, 3
    %p88 = pnand %p86, %p87
    %p89 = pneg %p88
    // Predicated region
    $region21: #{vit_lora_forward.14} parent=5 // pred_check
      _
    $region22: #{vit_lora_forward.14} parent=5 // pred_check_branch
      %91 = sbr.rel (%p88) target = $region24
    $region23: #{vit_lora_forward.14} parent=5 // pred_region
      %s92 = ssub.s32 %s7, 1
      %p93 = scmp.lt.s32.totalorder %s12, 1
      %s94 = scalar_select %p93, %s12, 1
      %s95 = smul.addr %s94, 2
      %s96 = smul.addr %s95, 4
      %s97 = scalar_lea.vmem %s0, %s96
      %p98 = pneg %p33
      %p99 = pneg %p30
      %p100 = pneg %p59
      %p101 = pneg %p56
      %p102 = scmp.lt.s32.totalorder %s12, 1
      %s103 = scalar_select %p102, %s12, 1
      %s104 = smul.addr %s103, 2
      %s105 = smul.addr %s104, 4
      %s106 = scalar_lea.vmem %s1, %s105
      %p107 = scmp.lt.s32.totalorder %s12, 1
      %s108 = scalar_select %p107, %s12, 1
      %s109 = smul.addr %s108, 2
      %s110 = smul.addr %s109, 4
      %s111 = scalar_lea.vmem %s0, %s110
      %p112 = scmp.lt.s32.totalorder %s12, 1
      %s113 = scalar_select %p112, %s12, 1
      %s114 = smul.addr %s113, 2
      %s115 = smul.addr %s114, 4
      %s116 = scalar_lea.vmem %s1, %s115
      %v118 = vld [vmem:[%s111] sm:$0xf]
      %v119 = vld [vmem:[%s111 + $0x4] sm:$0xf]
      %v120 = vlaneseq
      %v121 = vand.u32 %v120, 127
      %vm122 = vcmp.lt.s32.totalorder %v121, 5
      %v123 = vsel %vm122, 0.0, -1e+30
      %v124 = vunpack.c.l.bf16 %v118
      %v125 = vunpack.c.l.bf16 %v119
      %v126 = vmul.f32 %v124, 0.35355338
      %v127 = vmul.f32 %v125, 0.35355338
      %v128 = vpack.c.bf16 %v127, %v126
      %v131 = vunpack.c.l.b16 %v118
      %v132 = vunpack.c.l.b16 %v119
      %v133 = vpack.c.b16 %v132, %v131
      %134 = vrot.lane.b32.xlu0 %v133, 96
      %v135 = vpop.permute.xlu0 %134
      %vm136 = vcmask 64512
      %v138 = vsel %vm136, %v128, 0
      %v141 = vsel %vm136, %v135, 0
      %143 = vmatprep.subr.bf16.mxu0 0
      %144 = vmatpush1.bf16.xpose.msra.mxu0 0
      %145 = vmatprep.subr.bf16.mxu0 0
      %146 = vmatpush1.bf16.xpose.msra.mxu0 0
      %147 = vmatprep.subr.bf16.mxu0 0
      %148 = vmatpush1.bf16.xpose.msra.mxu0 0
      %149 = vmatprep.subr.bf16.mxu0 0
      %150 = vmatpush1.bf16.xpose.msra.mxu0 0
      %151 = vmatprep.subr.bf16.mxu0 0
      %152 = vmatpush1.bf16.xpose.msra.mxu0 0
      %153 = vmatprep.subr.bf16.mxu0 0
      %154 = vmatpush1.bf16.xpose.msra.mxu0 0
      %155 = vmatprep.subr.bf16.mxu0 0
      %156 = vmatpush1.bf16.xpose.msra.mxu0 0
      %157 = vmatprep.subr.bf16.mxu0 0
      %158 = vmatpush1.bf16.xpose.msra.mxu0 %v141
      %159 = vmatprep.subr.bf16.mxu0 0
      %160 = vmatpush2.bf16.xpose.msra.mxu0 0
      %161 = vmatprep.subr.bf16.mxu0 0
      %162 = vmatpush2.bf16.xpose.msra.mxu0 0
      %163 = vmatprep.subr.bf16.mxu0 0
      %164 = vmatpush2.bf16.xpose.msra.mxu0 0
      %165 = vmatprep.subr.bf16.mxu0 0
      %166 = vmatpush2.bf16.xpose.msra.mxu0 0
      %167 = vmatprep.subr.bf16.mxu0 0
      %168 = vmatpush2.bf16.xpose.msra.mxu0 0
      %169 = vmatprep.subr.bf16.mxu0 0
      %170 = vmatpush2.bf16.xpose.msra.mxu0 0
      %171 = vmatprep.subr.bf16.mxu0 0
      %172 = vmatpush2.bf16.xpose.msra.mxu0 0
      %173 = vmatprep.subr.bf16.mxu0 0
      %174 = vmatpush2.bf16.xpose.msra.mxu0 0
      %175 = vmatprep.mubr.bf16.mxu0 0
      %176 = vmatmul.mubr.bf16.gmra.mxu0 %v138
      %v177 = vpop.f32.mrf.mxu0
      %v178 = vadd.f32 %v123, %v177
      %v179 = vpop.f32.mrf.mxu0
      %v180 = vpop.f32.mrf.mxu0
      %v181 = vadd.f32 %v123, %v180
      %v182 = vpop.f32.mrf.mxu0
      %183 = vdwg.mxu0
      %vm184 = vcmask 130048
      %v185 = vsel %vm184, %v178, -inf
      %186 = vmax.xlane.f32.xlu0 %v185
      %v187 = vpop.xlane.xlu0 %186
      %v188 = vsel %vm184, %v181, -inf
      %189 = vmax.xlane.f32.xlu0 %v188
      %v190 = vpop.xlane.xlu0 %189
      %v191 = vsub.f32 %v178, %v187
      %v192 = vsub.f32 %v181, %v190
      %v193 = vmul.f32 %v191, 1.442695
      %v194 = vpow.pop %v193
      %v195 = vmul.f32 %v192, 1.442695
      %v196 = vpow.pop %v195
      %v197 = vsel %vm184, %v194, 0.0
      %198 = vadd.xlane.f32.xlu0 %v197
      %v199 = vpop.xlane.xlu0 %198
      %v200 = vsel %vm184, %v196, 0.0
      %201 = vadd.xlane.f32.xlu0 %v200
      %v202 = vpop.xlane.xlu0 %201
      %v203 = vrcp.pop %v199
      %v204 = vrcp.pop %v202
      %v205 = vmul.f32 %v194, %v203
      %v206 = vmul.f32 %v196, %v204
      %v207 = vpack.c.bf16 %v206, %v205
      %208 = vrot.lane.b32.xlu0 %v133, 64
      %v209 = vpop.permute.xlu0 %208
      %v212 = vsel %vm184, %v207, 0
      %214 = vmatprep.subr.bf16.mxu0 0
      %215 = vmatpush1.bf16.msra.mxu0 0
      %216 = vmatprep.subr.bf16.mxu0 0
      %217 = vmatpush1.bf16.msra.mxu0 0
      %218 = vmatprep.subr.bf16.mxu0 0
      %219 = vmatpush1.bf16.msra.mxu0 0
      %220 = vmatprep.subr.bf16.mxu0 0
      %221 = vmatpush1.bf16.msra.mxu0 0
      %222 = vmatprep.subr.bf16.mxu0 0
      %223 = vmatpush1.bf16.msra.mxu0 0
      %224 = vmatprep.subr.bf16.mxu0 0
      %225 = vmatpush1.bf16.msra.mxu0 0
      %226 = vmatprep.subr.bf16.mxu0 0
      %227 = vmatpush1.bf16.msra.mxu0 0
      %228 = vmatprep.subr.bf16.mxu0 0
      %229 = vmatpush1.bf16.msra.mxu0 %v209
      %230 = vmatprep.subr.bf16.mxu0 0
      %231 = vmatpush2.bf16.msra.mxu0 0
      %232 = vmatprep.subr.bf16.mxu0 0
      %233 = vmatpush2.bf16.msra.mxu0 0
      %234 = vmatprep.subr.bf16.mxu0 0
      %235 = vmatpush2.bf16.msra.mxu0 0
      %236 = vmatprep.subr.bf16.mxu0 0
      %237 = vmatpush2.bf16.msra.mxu0 0
      %238 = vmatprep.subr.bf16.mxu0 0
      %239 = vmatpush2.bf16.msra.mxu0 0
      %240 = vmatprep.subr.bf16.mxu0 0
      %241 = vmatpush2.bf16.msra.mxu0 0
      %242 = vmatprep.subr.bf16.mxu0 0
      %243 = vmatpush2.bf16.msra.mxu0 0
      %244 = vmatprep.subr.bf16.mxu0 0
      %245 = vmatpush2.bf16.msra.mxu0 0
      %246 = vmatprep.mubr.bf16.mxu0 0
      %247 = vmatmul.mubr.bf16.gmra.mxu0 %v212
      %v248 = vpop.f32.mrf.mxu0
      %v249 = vadd.f32 0.0, %v248
      %v250 = vpop.f32.mrf.mxu0
      %v251 = vpop.f32.mrf.mxu0
      %v252 = vadd.f32 0.0, %v251
      %v253 = vpop.f32.mrf.mxu0
      %254 = vdwg.mxu0
      %256 = vrot.lane.b32.xlu0 %v128, 120
      %v257 = vpop.permute.xlu0 %256
      %258 = vrot.lane.b32.xlu0 %v133, 88
      %v259 = vpop.permute.xlu0 %258
      %v261 = vsel %vm136, %v257, 0
      %v264 = vsel %vm136, %v259, 0
      %266 = vmatprep.subr.bf16.mxu0 0
      %267 = vmatpush1.bf16.xpose.msra.mxu0 0
      %268 = vmatprep.subr.bf16.mxu0 0
      %269 = vmatpush1.bf16.xpose.msra.mxu0 0
      %270 = vmatprep.subr.bf16.mxu0 0
      %271 = vmatpush1.bf16.xpose.msra.mxu0 0
      %272 = vmatprep.subr.bf16.mxu0 0
      %273 = vmatpush1.bf16.xpose.msra.mxu0 0
      %274 = vmatprep.subr.bf16.mxu0 0
      %275 = vmatpush1.bf16.xpose.msra.mxu0 0
      %276 = vmatprep.subr.bf16.mxu0 0
      %277 = vmatpush1.bf16.xpose.msra.mxu0 0
      %278 = vmatprep.subr.bf16.mxu0 0
      %279 = vmatpush1.bf16.xpose.msra.mxu0 0
      %280 = vmatprep.subr.bf16.mxu0 0
      %281 = vmatpush1.bf16.xpose.msra.mxu0 %v264
      %282 = vmatprep.subr.bf16.mxu0 0
      %283 = vmatpush2.bf16.xpose.msra.mxu0 0
      %284 = vmatprep.subr.bf16.mxu0 0
      %285 = vmatpush2.bf16.xpose.msra.mxu0 0
      %286 = vmatprep.subr.bf16.mxu0 0
      %287 = vmatpush2.bf16.xpose.msra.mxu0 0
      %288 = vmatprep.subr.bf16.mxu0 0
      %289 = vmatpush2.bf16.xpose.msra.mxu0 0
      %290 = vmatprep.subr.bf16.mxu0 0
      %291 = vmatpush2.bf16.xpose.msra.mxu0 0
      %292 = vmatprep.subr.bf16.mxu0 0
      %293 = vmatpush2.bf16.xpose.msra.mxu0 0
      %294 = vmatprep.subr.bf16.mxu0 0
      %295 = vmatpush2.bf16.xpose.msra.mxu0 0
      %296 = vmatprep.subr.bf16.mxu0 0
      %297 = vmatpush2.bf16.xpose.msra.mxu0 0
      %298 = vmatprep.mubr.bf16.mxu0 0
      %299 = vmatmul.mubr.bf16.gmra.mxu0 %v261
      %v300 = vpop.f32.mrf.mxu0
      %v301 = vadd.f32 %v123, %v300
      %v302 = vpop.f32.mrf.mxu0
      %v303 = vpop.f32.mrf.mxu0
      %v304 = vadd.f32 %v123, %v303
      %v305 = vpop.f32.mrf.mxu0
      %306 = vdwg.mxu0
      %v307 = vsel %vm184, %v301, -inf
      %308 = vmax.xlane.f32.xlu0 %v307
      %v309 = vpop.xlane.xlu0 %308
      %v310 = vsel %vm184, %v304, -inf
      %311 = vmax.xlane.f32.xlu0 %v310
      %v312 = vpop.xlane.xlu0 %311
      %v313 = vsub.f32 %v301, %v309
      %v314 = vsub.f32 %v304, %v312
      %v315 = vmul.f32 %v313, 1.442695
      %v316 = vpow.pop %v315
      %v317 = vmul.f32 %v314, 1.442695
      %v318 = vpow.pop %v317
      %v319 = vsel %vm184, %v316, 0.0
      %320 = vadd.xlane.f32.xlu0 %v319
      %v321 = vpop.xlane.xlu0 %320
      %v322 = vsel %vm184, %v318, 0.0
      %323 = vadd.xlane.f32.xlu0 %v322
      %v324 = vpop.xlane.xlu0 %323
      %v325 = vrcp.pop %v321
      %v326 = vrcp.pop %v324
      %v327 = vmul.f32 %v316, %v325
      %v328 = vmul.f32 %v318, %v326
      %v329 = vpack.c.bf16 %v328, %v327
      %330 = vrot.lane.b32.xlu0 %v133, 56
      %v331 = vpop.permute.xlu0 %330
      %v334 = vsel %vm184, %v329, 0
      %336 = vmatprep.subr.bf16.mxu0 0
      %337 = vmatpush1.bf16.msra.mxu0 0
      %338 = vmatprep.subr.bf16.mxu0 0
      %339 = vmatpush1.bf16.msra.mxu0 0
      %340 = vmatprep.subr.bf16.mxu0 0
      %341 = vmatpush1.bf16.msra.mxu0 0
      %342 = vmatprep.subr.bf16.mxu0 0
      %343 = vmatpush1.bf16.msra.mxu0 0
      %344 = vmatprep.subr.bf16.mxu0 0
      %345 = vmatpush1.bf16.msra.mxu0 0
      %346 = vmatprep.subr.bf16.mxu0 0
      %347 = vmatpush1.bf16.msra.mxu0 0
      %348 = vmatprep.subr.bf16.mxu0 0
      %349 = vmatpush1.bf16.msra.mxu0 0
      %350 = vmatprep.subr.bf16.mxu0 0
      %351 = vmatpush1.bf16.msra.mxu0 %v331
      %352 = vmatprep.subr.bf16.mxu0 0
      %353 = vmatpush2.bf16.msra.mxu0 0
      %354 = vmatprep.subr.bf16.mxu0 0
      %355 = vmatpush2.bf16.msra.mxu0 0
      %356 = vmatprep.subr.bf16.mxu0 0
      %357 = vmatpush2.bf16.msra.mxu0 0
      %358 = vmatprep.subr.bf16.mxu0 0
      %359 = vmatpush2.bf16.msra.mxu0 0
      %360 = vmatprep.subr.bf16.mxu0 0
      %361 = vmatpush2.bf16.msra.mxu0 0
      %362 = vmatprep.subr.bf16.mxu0 0
      %363 = vmatpush2.bf16.msra.mxu0 0
      %364 = vmatprep.subr.bf16.mxu0 0
      %365 = vmatpush2.bf16.msra.mxu0 0
      %366 = vmatprep.subr.bf16.mxu0 0
      %367 = vmatpush2.bf16.msra.mxu0 0
      %368 = vmatprep.mubr.bf16.mxu0 0
      %369 = vmatmul.mubr.bf16.gmra.mxu0 %v334
      %v370 = vpop.f32.mrf.mxu0
      %v371 = vadd.f32 0.0, %v370
      %v372 = vpop.f32.mrf.mxu0
      %v373 = vpop.f32.mrf.mxu0
      %v374 = vadd.f32 0.0, %v373
      %v375 = vpop.f32.mrf.mxu0
      %376 = vdwg.mxu0
      %377 = vrot.lane.b32.xlu0 %v128, 112
      %v378 = vpop.permute.xlu0 %377
      %379 = vrot.lane.b32.xlu0 %v133, 80
      %v380 = vpop.permute.xlu0 %379
      %v382 = vsel %vm136, %v378, 0
      %v385 = vsel %vm136, %v380, 0
      %387 = vmatprep.subr.bf16.mxu0 0
      %388 = vmatpush1.bf16.xpose.msra.mxu0 0
      %389 = vmatprep.subr.bf16.mxu0 0
      %390 = vmatpush1.bf16.xpose.msra.mxu0 0
      %391 = vmatprep.subr.bf16.mxu0 0
      %392 = vmatpush1.bf16.xpose.msra.mxu0 0
      %393 = vmatprep.subr.bf16.mxu0 0
      %394 = vmatpush1.bf16.xpose.msra.mxu0 0
      %395 = vmatprep.subr.bf16.mxu0 0
      %396 = vmatpush1.bf16.xpose.msra.mxu0 0
      %397 = vmatprep.subr.bf16.mxu0 0
      %398 = vmatpush1.bf16.xpose.msra.mxu0 0
      %399 = vmatprep.subr.bf16.mxu0 0
      %400 = vmatpush1.bf16.xpose.msra.mxu0 0
      %401 = vmatprep.subr.bf16.mxu0 0
      %402 = vmatpush1.bf16.xpose.msra.mxu0 %v385
      %403 = vmatprep.subr.bf16.mxu0 0
      %404 = vmatpush2.bf16.xpose.msra.mxu0 0
      %405 = vmatprep.subr.bf16.mxu0 0
      %406 = vmatpush2.bf16.xpose.msra.mxu0 0
      %407 = vmatprep.subr.bf16.mxu0 0
      %408 = vmatpush2.bf16.xpose.msra.mxu0 0
      %409 = vmatprep.subr.bf16.mxu0 0
      %410 = vmatpush2.bf16.xpose.msra.mxu0 0
      %411 = vmatprep.subr.bf16.mxu0 0
      %412 = vmatpush2.bf16.xpose.msra.mxu0 0
      %413 = vmatprep.subr.bf16.mxu0 0
      %414 = vmatpush2.bf16.xpose.msra.mxu0 0
      %415 = vmatprep.subr.bf16.mxu0 0
      %416 = vmatpush2.bf16.xpose.msra.mxu0 0
      %417 = vmatprep.subr.bf16.mxu0 0
      %418 = vmatpush2.bf16.xpose.msra.mxu0 0
      %419 = vmatprep.mubr.bf16.mxu0 0
      %420 = vmatmul.mubr.bf16.gmra.mxu0 %v382
      %v421 = vpop.f32.mrf.mxu0
      %v422 = vadd.f32 %v123, %v421
      %v423 = vpop.f32.mrf.mxu0
      %v424 = vpop.f32.mrf.mxu0
      %v425 = vadd.f32 %v123, %v424
      %v426 = vpop.f32.mrf.mxu0
      %427 = vdwg.mxu0
      %v428 = vsel %vm184, %v422, -inf
      %429 = vmax.xlane.f32.xlu0 %v428
      %v430 = vpop.xlane.xlu0 %429
      %v431 = vsel %vm184, %v425, -inf
      %432 = vmax.xlane.f32.xlu0 %v431
      %v433 = vpop.xlane.xlu0 %432
      %v434 = vsub.f32 %v422, %v430
      %v435 = vsub.f32 %v425, %v433
      %v436 = vmul.f32 %v434, 1.442695
      %v437 = vpow.pop %v436
      %v438 = vmul.f32 %v435, 1.442695
      %v439 = vpow.pop %v438
      %v440 = vsel %vm184, %v437, 0.0
      %441 = vadd.xlane.f32.xlu0 %v440
      %v442 = vpop.xlane.xlu0 %441
      %v443 = vsel %vm184, %v439, 0.0
      %444 = vadd.xlane.f32.xlu0 %v443
      %v445 = vpop.xlane.xlu0 %444
      %v446 = vrcp.pop %v442
      %v447 = vrcp.pop %v445
      %v448 = vmul.f32 %v437, %v446
      %v449 = vmul.f32 %v439, %v447
      %v450 = vpack.c.bf16 %v449, %v448
      %451 = vrot.lane.b32.xlu0 %v133, 48
      %v452 = vpop.permute.xlu0 %451
      %v455 = vsel %vm184, %v450, 0
      %457 = vmatprep.subr.bf16.mxu0 0
      %458 = vmatpush1.bf16.msra.mxu0 0
      %459 = vmatprep.subr.bf16.mxu0 0
      %460 = vmatpush1.bf16.msra.mxu0 0
      %461 = vmatprep.subr.bf16.mxu0 0
      %462 = vmatpush1.bf16.msra.mxu0 0
      %463 = vmatprep.subr.bf16.mxu0 0
      %464 = vmatpush1.bf16.msra.mxu0 0
      %465 = vmatprep.subr.bf16.mxu0 0
      %466 = vmatpush1.bf16.msra.mxu0 0
      %467 = vmatprep.subr.bf16.mxu0 0
      %468 = vmatpush1.bf16.msra.mxu0 0
      %469 = vmatprep.subr.bf16.mxu0 0
      %470 = vmatpush1.bf16.msra.mxu0 0
      %471 = vmatprep.subr.bf16.mxu0 0
      %472 = vmatpush1.bf16.msra.mxu0 %v452
      %473 = vmatprep.subr.bf16.mxu0 0
      %474 = vmatpush2.bf16.msra.mxu0 0
      %475 = vmatprep.subr.bf16.mxu0 0
      %476 = vmatpush2.bf16.msra.mxu0 0
      %477 = vmatprep.subr.bf16.mxu0 0
      %478 = vmatpush2.bf16.msra.mxu0 0
      %479 = vmatprep.subr.bf16.mxu0 0
      %480 = vmatpush2.bf16.msra.mxu0 0
      %481 = vmatprep.subr.bf16.mxu0 0
      %482 = vmatpush2.bf16.msra.mxu0 0
      %483 = vmatprep.subr.bf16.mxu0 0
      %484 = vmatpush2.bf16.msra.mxu0 0
      %485 = vmatprep.subr.bf16.mxu0 0
      %486 = vmatpush2.bf16.msra.mxu0 0
      %487 = vmatprep.subr.bf16.mxu0 0
      %488 = vmatpush2.bf16.msra.mxu0 0
      %489 = vmatprep.mubr.bf16.mxu0 0
      %490 = vmatmul.mubr.bf16.gmra.mxu0 %v455
      %v491 = vpop.f32.mrf.mxu0
      %v492 = vadd.f32 0.0, %v491
      %v493 = vpop.f32.mrf.mxu0
      %v494 = vpop.f32.mrf.mxu0
      %v495 = vadd.f32 0.0, %v494
      %v496 = vpop.f32.mrf.mxu0
      %497 = vdwg.mxu0
      %498 = vrot.lane.b32.xlu0 %v128, 104
      %v499 = vpop.permute.xlu0 %498
      %500 = vrot.lane.b32.xlu0 %v133, 72
      %v501 = vpop.permute.xlu0 %500
      %v503 = vsel %vm136, %v499, 0
      %v506 = vsel %vm136, %v501, 0
      %508 = vmatprep.subr.bf16.mxu0 0
      %509 = vmatpush1.bf16.xpose.msra.mxu0 0
      %510 = vmatprep.subr.bf16.mxu0 0
      %511 = vmatpush1.bf16.xpose.msra.mxu0 0
      %512 = vmatprep.subr.bf16.mxu0 0
      %513 = vmatpush1.bf16.xpose.msra.mxu0 0
      %514 = vmatprep.subr.bf16.mxu0 0
      %515 = vmatpush1.bf16.xpose.msra.mxu0 0
      %516 = vmatprep.subr.bf16.mxu0 0
      %517 = vmatpush1.bf16.xpose.msra.mxu0 0
      %518 = vmatprep.subr.bf16.mxu0 0
      %519 = vmatpush1.bf16.xpose.msra.mxu0 0
      %520 = vmatprep.subr.bf16.mxu0 0
      %521 = vmatpush1.bf16.xpose.msra.mxu0 0
      %522 = vmatprep.subr.bf16.mxu0 0
      %523 = vmatpush1.bf16.xpose.msra.mxu0 %v506
      %524 = vmatprep.subr.bf16.mxu0 0
      %525 = vmatpush2.bf16.xpose.msra.mxu0 0
      %526 = vmatprep.subr.bf16.mxu0 0
      %527 = vmatpush2.bf16.xpose.msra.mxu0 0
      %528 = vmatprep.subr.bf16.mxu0 0
      %529 = vmatpush2.bf16.xpose.msra.mxu0 0
      %530 = vmatprep.subr.bf16.mxu0 0
      %531 = vmatpush2.bf16.xpose.msra.mxu0 0
      %532 = vmatprep.subr.bf16.mxu0 0
      %533 = vmatpush2.bf16.xpose.msra.mxu0 0
      %534 = vmatprep.subr.bf16.mxu0 0
      %535 = vmatpush2.bf16.xpose.msra.mxu0 0
      %536 = vmatprep.subr.bf16.mxu0 0
      %537 = vmatpush2.bf16.xpose.msra.mxu0 0
      %538 = vmatprep.subr.bf16.mxu0 0
      %539 = vmatpush2.bf16.xpose.msra.mxu0 0
      %540 = vmatprep.mubr.bf16.mxu0 0
      %541 = vmatmul.mubr.bf16.gmra.mxu0 %v503
      %v542 = vpop.f32.mrf.mxu0
      %v543 = vadd.f32 %v123, %v542
      %v544 = vpop.f32.mrf.mxu0
      %v545 = vpop.f32.mrf.mxu0
      %v546 = vadd.f32 %v123, %v545
      %v547 = vpop.f32.mrf.mxu0
      %548 = vdwg.mxu0
      %v549 = vsel %vm184, %v543, -inf
      %550 = vmax.xlane.f32.xlu0 %v549
      %v551 = vpop.xlane.xlu0 %550
      %v552 = vsel %vm184, %v546, -inf
      %553 = vmax.xlane.f32.xlu0 %v552
      %v554 = vpop.xlane.xlu0 %553
      %v555 = vsub.f32 %v543, %v551
      %v556 = vsub.f32 %v546, %v554
      %v557 = vmul.f32 %v555, 1.442695
      %v558 = vpow.pop %v557
      %v559 = vmul.f32 %v556, 1.442695
      %v560 = vpow.pop %v559
      %v561 = vsel %vm184, %v558, 0.0
      %562 = vadd.xlane.f32.xlu0 %v561
      %v563 = vpop.xlane.xlu0 %562
      %v564 = vsel %vm184, %v560, 0.0
      %565 = vadd.xlane.f32.xlu0 %v564
      %v566 = vpop.xlane.xlu0 %565
      %v567 = vrcp.pop %v563
      %v568 = vrcp.pop %v566
      %v569 = vmul.f32 %v558, %v567
      %v570 = vmul.f32 %v560, %v568
      %v571 = vpack.c.bf16 %v570, %v569
      %572 = vrot.lane.b32.xlu0 %v133, 40
      %v573 = vpop.permute.xlu0 %572
      %v576 = vsel %vm184, %v571, 0
      %578 = vmatprep.subr.bf16.mxu0 0
      %579 = vmatpush1.bf16.msra.mxu0 0
      %580 = vmatprep.subr.bf16.mxu0 0
      %581 = vmatpush1.bf16.msra.mxu0 0
      %582 = vmatprep.subr.bf16.mxu0 0
      %583 = vmatpush1.bf16.msra.mxu0 0
      %584 = vmatprep.subr.bf16.mxu0 0
      %585 = vmatpush1.bf16.msra.mxu0 0
      %586 = vmatprep.subr.bf16.mxu0 0
      %587 = vmatpush1.bf16.msra.mxu0 0
      %588 = vmatprep.subr.bf16.mxu0 0
      %589 = vmatpush1.bf16.msra.mxu0 0
      %590 = vmatprep.subr.bf16.mxu0 0
      %591 = vmatpush1.bf16.msra.mxu0 0
      %592 = vmatprep.subr.bf16.mxu0 0
      %593 = vmatpush1.bf16.msra.mxu0 %v573
      %594 = vmatprep.subr.bf16.mxu0 0
      %595 = vmatpush2.bf16.msra.mxu0 0
      %596 = vmatprep.subr.bf16.mxu0 0
      %597 = vmatpush2.bf16.msra.mxu0 0
      %598 = vmatprep.subr.bf16.mxu0 0
      %599 = vmatpush2.bf16.msra.mxu0 0
      %600 = vmatprep.subr.bf16.mxu0 0
      %601 = vmatpush2.bf16.msra.mxu0 0
      %602 = vmatprep.subr.bf16.mxu0 0
      %603 = vmatpush2.bf16.msra.mxu0 0
      %604 = vmatprep.subr.bf16.mxu0 0
      %605 = vmatpush2.bf16.msra.mxu0 0
      %606 = vmatprep.subr.bf16.mxu0 0
      %607 = vmatpush2.bf16.msra.mxu0 0
      %608 = vmatprep.subr.bf16.mxu0 0
      %609 = vmatpush2.bf16.msra.mxu0 0
      %610 = vmatprep.mubr.bf16.mxu0 0
      %611 = vmatmul.mubr.bf16.gmra.mxu0 %v576
      %v612 = vpop.f32.mrf.mxu0
      %v613 = vadd.f32 0.0, %v612
      %v614 = vpop.f32.mrf.mxu0
      %v615 = vpop.f32.mrf.mxu0
      %v616 = vadd.f32 0.0, %v615
      %v617 = vpop.f32.mrf.mxu0
      %618 = vdwg.mxu0
      %621 = vrot.lane.b32.xlu0 %v371, 8
      %v622 = vpop.permute.xlu0 %621
      %623 = vrot.lane.b32.xlu0 %v374, 8
      %v624 = vpop.permute.xlu0 %623
      %629 = vrot.lane.b32.xlu0 %v492, 16
      %v630 = vpop.permute.xlu0 %629
      %631 = vrot.lane.b32.xlu0 %v495, 16
      %v632 = vpop.permute.xlu0 %631
      %637 = vrot.lane.b32.xlu0 %v613, 24
      %v638 = vpop.permute.xlu0 %637
      %639 = vrot.lane.b32.xlu0 %v616, 24
      %v640 = vpop.permute.xlu0 %639
      %v643 = vsel %vm136, %v249, %v622
      %v644 = vsel %vm136, %v252, %v624
      %v645 = vsel %vm184, %v643, %v630
      %v646 = vsel %vm184, %v644, %v632
      %vm647 = vcmask 195584
      %v648 = vsel %vm647, %v645, %v638
      %v649 = vsel %vm647, %v646, %v640
      %v650 = vpack.c.bf16 %v649, %v648
      %v652 = vunpack.c.l.b16 %v650
      %v653 = vunpack.c.h.b16 %v650
      %v654 = vpack.c.b16 %v652, %v652
      %v655 = vpack.c.b16 %v653, %v653
      %vm658 = vcmask 257024
      %659 = vst.msk [vmem:[%s116] sm:$0xf] %vm658, %v654
      %660 = vst.msk [vmem:[%s116 + $0x4] sm:$0xf] %vm658, %v655
      %p661 = scmp.lt.s32.totalorder %s12, 1
      %s662 = scalar_select %p661, %s12, 1
      %s663 = smul.addr %s662, 2
      %s664 = smul.addr %s663, 4
      %s665 = scalar_lea.vmem %s1, %s664
      // Predicated region
      $region25: #{vit_lora_forward.14} parent=23 // pred_check
        %p666 = pneg %p56
      $region26: #{vit_lora_forward.14} parent=23 // pred_check_branch
        %668 = sbr.rel (%p666) target = $region28
      $region27: #{vit_lora_forward.14} parent=23 // pred_region
        _
      $region28: #{vit_lora_forward.14} parent=23 // pred_fallthru
        _
    $region24: #{vit_lora_forward.14} parent=5 // pred_fallthru
      _
    %p669 = scmp.le.s32.totalorder 2, %s7
    // Predicated region
    $region29: #{vit_lora_forward.14} parent=5 // pred_check
      %p670 = pneg %p669
    $region30: #{vit_lora_forward.14} parent=5 // pred_check_branch
      %672 = sbr.rel (%p670) target = $region32
    $region31: #{vit_lora_forward.14} parent=5 // pred_region
      %s673 = ssub.s32 %s7, 2
      // Predicated region
      $region33: #{vit_lora_forward.14} parent=31 // pred_check
        %p674 = pneg %p62
      $region34: #{vit_lora_forward.14} parent=31 // pred_check_branch
        %676 = sbr.rel (%p674) target = $region36
      $region35: #{vit_lora_forward.14} parent=31 // pred_region
        %p677 = scmp.lt.s32.totalorder %s13, 1
        %s678 = scalar_select %p677, %s13, 1
        %s679 = smul.addr %s678, 2
        %s680 = smul.addr %s679, 4
        %s681 = scalar_lea.vmem %s1, %s680
      $region36: #{vit_lora_forward.14} parent=31 // pred_fallthru
        _
    $region32: #{vit_lora_forward.14} parent=5 // pred_fallthru
      _
  $region6: #{vit_lora_forward.14} parent=0 // loop_footer
    %s11 = sadd.s32 1, %s7
  $region7: #{vit_lora_forward.14} parent=0 // loop_footer_branch
    %6 = sbr.rel target = $region3
  $region8: #{vit_lora_forward.14} parent=0 // loop_exit
    _

// kernel: vit_lora_forward.23
$region0: #{vit_lora_forward.23}
  #allocation0 [shape = 'u32[]', space=smem, size = 0x4, offset = 0x4, fixed_abs, tag = 'smem constant byte address 0x4 - core index']
  #allocation1 [shape = 'u32[144,128]{1,0:T(1,128)}', space=vmem, size = 0x12000, scoped, tag = 'internal scratch']
  #allocation2 [shape = 'bf16[2,32]{1,0:T(2,128)(2,1)}', space=vmem, size = 0x200, scoped, tag = 'scratch operand']
  %s0 = inlined_call_operand.vmem [shape: bf16[2,32], index: 0, kind: input, shape index: {}]
  %s1 = inlined_call_operand.vmem [shape: f32[1,32], index: 1, kind: input, shape index: {}]
  %s2 = inlined_call_operand.vmem [shape: f32[1,32], index: 2, kind: input, shape index: {}]
  %s3 = inlined_call_operand.vmem [shape: bf16[32,128], index: 3, kind: input, shape index: {}]
  %s4 = inlined_call_operand.vmem [shape: f32[1,128], index: 4, kind: input, shape index: {}]
  %s5 = inlined_call_operand.hbm [shape: f32[2,128], index: 5, kind: output, shape index: {}]
  %s6 = sld [smem:[#allocation0]]
  $region34: #{vit_lora_forward.23} parent=0
    _
  %s8 = ssub.s32 1, %s6
  %s9 = scalar_select 0, %s8, %s6
  $region1: #{vit_lora_forward.23} parent=0
    #allocation3 [shape = 'u8[1024]{0}', space=vmem, size = 0x400, scoped, tag = 'output window, operand 0, single buffered']
    #allocation4 [shape = 's32[1]{0}', space=sflag, size = 0x4, scoped, tag = 'scoped memory for vit_lora_forward.23']
    %10 = vsyncpa [#allocation4], 0
    // Predicated region
    $region2: #{vit_lora_forward.23} parent=1 // pred_check
      _
    $region3: #{vit_lora_forward.23} parent=1 // pred_check_branch
      %12 = sbr.rel (0) target = $region5
    $region4: #{vit_lora_forward.23} parent=1 // pred_region
      _
    $region5: #{vit_lora_forward.23} parent=1 // pred_fallthru
      _
    // Predicated region
    $region6: #{vit_lora_forward.23} parent=1 // pred_check
      _
    $region7: #{vit_lora_forward.23} parent=1 // pred_check_branch
      %14 = sbr.rel (0) target = $region9
    $region8: #{vit_lora_forward.23} parent=1 // pred_region
      _
    $region9: #{vit_lora_forward.23} parent=1 // pred_fallthru
      _
    // Predicated region
    $region10: #{vit_lora_forward.23} parent=1 // pred_check
      _
    $region11: #{vit_lora_forward.23} parent=1 // pred_check_branch
      %16 = sbr.rel (0) target = $region13
    $region12: #{vit_lora_forward.23} parent=1 // pred_region
      _
    $region13: #{vit_lora_forward.23} parent=1 // pred_fallthru
      _
    // Predicated region
    $region14: #{vit_lora_forward.23} parent=1 // pred_check
      _
    $region15: #{vit_lora_forward.23} parent=1 // pred_check_branch
      %18 = sbr.rel (0) target = $region17
    $region16: #{vit_lora_forward.23} parent=1 // pred_region
      _
    $region17: #{vit_lora_forward.23} parent=1 // pred_fallthru
      _
    // Predicated region
    $region18: #{vit_lora_forward.23} parent=1 // pred_check
      _
    $region19: #{vit_lora_forward.23} parent=1 // pred_check_branch
      %20 = sbr.rel (0) target = $region21
    $region20: #{vit_lora_forward.23} parent=1 // pred_region
      _
    $region21: #{vit_lora_forward.23} parent=1 // pred_fallthru
      _
    %p22 = scmp.eq.s32.totalorder 0, 0
    // Predicated region
    $region22: #{vit_lora_forward.23} parent=1 // pred_check
      %p23 = pneg %p22
    $region23: #{vit_lora_forward.23} parent=1 // pred_check_branch
      %25 = sbr.rel (%p23) target = $region25
    $region24: #{vit_lora_forward.23} parent=1 // pred_region
      %v26 = vld [vmem:[%s0] sm:$0x1]
      %v27 = vunpack.c.l.bf16 %v26
      %vm28 = vcmask 254976
      %v29 = vsel %vm28, %v27, 0.0
      %30 = vadd.xlane.f32.xlu0 %v29
      %v31 = vpop.xlane.xlu0 %30
      %v32 = vrcp.pop 32.0
      %v33 = vmul.f32 %v31, %v32
      %v34 = vsub.f32 %v27, %v33
      %v35 = vmul.f32 %v34, %v34
      %v36 = vsel %vm28, %v35, 0.0
      %37 = vadd.xlane.f32.xlu0 %v36
      %v38 = vpop.xlane.xlu0 %37
      %v39 = vmul.f32 %v38, %v32
      %v40 = vadd.f32 %v39, 1e-06
      %v41 = vrsqrt.pop %v40
      %v42 = vmul.f32 %v34, %v41
      %v43 = vld [vmem:[%s1] sm:$0x1]
      %v45 = vlaneseq
      %v46 = vshrl.u32 %v45, 7
      %v47 = vsub.s32 0, %v46
      %v48 = vrot.slane %v43, %v47
      %v50 = vmul.f32 %v42, %v48
      %v51 = vld [vmem:[%s2] sm:$0x1]
      %v53 = vlaneseq
      %v54 = vshrl.u32 %v53, 7
      %v55 = vsub.s32 0, %v54
      %v56 = vrot.slane %v51, %v55
      %v58 = vadd.f32 %v50, %v56
      %v59 = vpack.c.bf16 %v58, %v58
      %vm60 = vcmask 253952
      %61 = vst.msk [vmem:[#allocation2] sm:$0x1] %vm60, %v59
    $region25: #{vit_lora_forward.23} parent=1 // pred_fallthru
      _
    %v62 = vld [vmem:[#allocation2] sm:$0x1]
    %v63 = vld [vmem:[%s3] sm:$0xf]
    %v64 = vld [vmem:[%s3 + $0x4] sm:$0xf]
    %v65 = vld [vmem:[%s3 + $0x8] sm:$0xf]
    %v66 = vld [vmem:[%s3 + $0xc] sm:$0xf]
    %v67 = vld [vmem:[%s4] sm:$0x1]
    %v69 = vlaneseq
    %v70 = vshrl.u32 %v69, 7
    %v71 = vsub.s32 0, %v70
    %v72 = vrot.slane %v67, %v71
    %v78 = vunpack.c.l.b16 %v63
    %v79 = vunpack.c.l.b16 %v64
    %v80 = vunpack.c.l.b16 %v65
    %v81 = vunpack.c.l.b16 %v66
    %v82 = vpack.c.b16 %v79, %v78
    %v83 = vpack.c.b16 %v81, %v80
    %vm86 = vcmask 261120
    %v88 = vsel %vm86, %v62, 0
    %90 = vmatprep.subr.bf16.mxu0 0
    %91 = vmatpush1.bf16.msra.mxu0 0
    %92 = vmatprep.subr.bf16.mxu0 0
    %93 = vmatpush1.bf16.msra.mxu0 0
    %94 = vmatprep.subr.bf16.mxu0 0
    %95 = vmatpush1.bf16.msra.mxu0 0
    %96 = vmatprep.subr.bf16.mxu0 0
    %97 = vmatpush1.bf16.msra.mxu0 0
    %98 = vmatprep.subr.bf16.mxu0 0
    %99 = vmatpush1.bf16.msra.mxu0 0
    %100 = vmatprep.subr.bf16.mxu0 0
    %101 = vmatpush1.bf16.msra.mxu0 0
    %102 = vmatprep.subr.bf16.mxu0 0
    %103 = vmatpush1.bf16.msra.mxu0 %v83
    %104 = vmatprep.subr.bf16.mxu0 0
    %105 = vmatpush1.bf16.msra.mxu0 %v82
    %106 = vmatprep.subr.bf16.mxu0 0
    %107 = vmatpush2.bf16.msra.mxu0 0
    %108 = vmatprep.subr.bf16.mxu0 0
    %109 = vmatpush2.bf16.msra.mxu0 0
    %110 = vmatprep.subr.bf16.mxu0 0
    %111 = vmatpush2.bf16.msra.mxu0 0
    %112 = vmatprep.subr.bf16.mxu0 0
    %113 = vmatpush2.bf16.msra.mxu0 0
    %114 = vmatprep.subr.bf16.mxu0 0
    %115 = vmatpush2.bf16.msra.mxu0 0
    %116 = vmatprep.subr.bf16.mxu0 0
    %117 = vmatpush2.bf16.msra.mxu0 0
    %118 = vmatprep.subr.bf16.mxu0 0
    %119 = vmatpush2.bf16.msra.mxu0 0
    %120 = vmatprep.subr.bf16.mxu0 0
    %121 = vmatpush2.bf16.msra.mxu0 0
    %122 = vmatprep.mubr.bf16.mxu0 0
    %123 = vmatmul.mubr.bf16.gmra.mxu0 %v88
    %v124 = vpop.f32.mrf.mxu0
    %v125 = vadd.f32 %v72, %v124
    %v126 = vpop.f32.mrf.mxu0
    %v127 = vpop.f32.mrf.mxu0
    %v128 = vpop.f32.mrf.mxu0
    %129 = vdwg.mxu0
    %130 = vst [vmem:[#allocation3] sm:$0x3] %v125
    // Predicated region
    $region26: #{vit_lora_forward.23} parent=1 // pred_check
      _
    $region27: #{vit_lora_forward.23} parent=1 // pred_check_branch
      %132 = sbr.rel (0) target = $region29
    $region28: #{vit_lora_forward.23} parent=1 // pred_region
      %s134 = ssub.s32 32, 32
      %135 = vsyncadd [#allocation4], %s134
      %s137 = sshll.u32 [#allocation3], 4
      %s138 = int_to_ptr.vmem [resolvable:$true] %s137
      %140 = dma.vmem_to_hbm [thread:$0]  %s138, 32, %s5, [#allocation4]
    $region29: #{vit_lora_forward.23} parent=1 // pred_fallthru
      _
    // Predicated region
    $region30: #{vit_lora_forward.23} parent=1 // pred_check
      _
    $region31: #{vit_lora_forward.23} parent=1 // pred_check_branch
      %142 = sbr.rel (0) target = $region33
    $region32: #{vit_lora_forward.23} parent=1 // pred_region
      %143 = dma.done [#allocation4], 32
    $region33: #{vit_lora_forward.23} parent=1 // pred_fallthru
      _
    %144 = vsyncpa [#allocation4], 1

// kernel: vit_lora_forward.16
$region0: #{vit_lora_forward.16}
  #allocation0 [shape = 'u32[]', space=smem, size = 0x4, offset = 0x4, fixed_abs, tag = 'smem constant byte address 0x4 - core index']
  #allocation1 [shape = 'u32[144,128]{1,0:T(1,128)}', space=vmem, size = 0x12000, scoped, tag = 'internal scratch']
  #allocation2 [shape = 'bf16[32,32]{1,0:T(8,128)(2,1)}', space=vmem, size = 0x2000, scoped, tag = 'scratch operand']
  %s0 = inlined_call_operand.vmem [shape: bf16[32,32], index: 0, kind: input, shape index: {}]
  %s1 = inlined_call_operand.vmem [shape: f32[1,32], index: 1, kind: input, shape index: {}]
  %s2 = inlined_call_operand.vmem [shape: f32[1,32], index: 2, kind: input, shape index: {}]
  %s3 = inlined_call_operand.vmem [shape: bf16[32,128], index: 3, kind: input, shape index: {}]
  %s4 = inlined_call_operand.vmem [shape: f32[1,128], index: 4, kind: input, shape index: {}]
  %s5 = inlined_call_operand.vmem [shape: bf16[32,128], index: 5, kind: output, shape index: {}]
  %s6 = sld [smem:[#allocation0]]
  $region34: #{vit_lora_forward.16} parent=0
    _
  %s8 = ssub.s32 1, %s6
  %s9 = scalar_select 0, %s8, %s6
  // Predicated region
  $region2: #{vit_lora_forward.16} parent=0 // pred_check
    _
  $region3: #{vit_lora_forward.16} parent=0 // pred_check_branch
    %11 = sbr.rel (0) target = $region5
  $region4: #{vit_lora_forward.16} parent=0 // pred_region
    _
  $region5: #{vit_lora_forward.16} parent=0 // pred_fallthru
    _
  // Predicated region
  $region6: #{vit_lora_forward.16} parent=0 // pred_check
    _
  $region7: #{vit_lora_forward.16} parent=0 // pred_check_branch
    %13 = sbr.rel (0) target = $region9
  $region8: #{vit_lora_forward.16} parent=0 // pred_region
    _
  $region9: #{vit_lora_forward.16} parent=0 // pred_fallthru
    _
  // Predicated region
  $region10: #{vit_lora_forward.16} parent=0 // pred_check
    _
  $region11: #{vit_lora_forward.16} parent=0 // pred_check_branch
    %15 = sbr.rel (0) target = $region13
  $region12: #{vit_lora_forward.16} parent=0 // pred_region
    _
  $region13: #{vit_lora_forward.16} parent=0 // pred_fallthru
    _
  // Predicated region
  $region14: #{vit_lora_forward.16} parent=0 // pred_check
    _
  $region15: #{vit_lora_forward.16} parent=0 // pred_check_branch
    %17 = sbr.rel (0) target = $region17
  $region16: #{vit_lora_forward.16} parent=0 // pred_region
    _
  $region17: #{vit_lora_forward.16} parent=0 // pred_fallthru
    _
  // Predicated region
  $region18: #{vit_lora_forward.16} parent=0 // pred_check
    _
  $region19: #{vit_lora_forward.16} parent=0 // pred_check_branch
    %19 = sbr.rel (0) target = $region21
  $region20: #{vit_lora_forward.16} parent=0 // pred_region
    _
  $region21: #{vit_lora_forward.16} parent=0 // pred_fallthru
    _
  %p21 = scmp.eq.s32.totalorder 0, 0
  // Predicated region
  $region22: #{vit_lora_forward.16} parent=0 // pred_check
    %p22 = pneg %p21
  $region23: #{vit_lora_forward.16} parent=0 // pred_check_branch
    %24 = sbr.rel (%p22) target = $region25
  $region24: #{vit_lora_forward.16} parent=0 // pred_region
    %v25 = vld [vmem:[%s0] sm:$0xf]
    %v26 = vld [vmem:[%s0 + $0x4] sm:$0xf]
    %v27 = vld [vmem:[%s0 + $0x8] sm:$0xf]
    %v28 = vld [vmem:[%s0 + $0xc] sm:$0xf]
    %v29 = vunpack.c.l.bf16 %v25
    %v30 = vunpack.c.l.bf16 %v26
    %v31 = vunpack.c.l.bf16 %v27
    %v32 = vunpack.c.l.bf16 %v28
    %vm33 = vcmask 261120
    %v34 = vsel %vm33, %v29, 0.0
    %35 = vadd.xlane.f32.xlu0 %v34
    %v36 = vpop.xlane.xlu0 %35
    %v37 = vsel %vm33, %v30, 0.0
    %38 = vadd.xlane.f32.xlu0 %v37
    %v39 = vpop.xlane.xlu0 %38
    %v40 = vsel %vm33, %v31, 0.0
    %41 = vadd.xlane.f32.xlu0 %v40
    %v42 = vpop.xlane.xlu0 %41
    %v43 = vsel %vm33, %v32, 0.0
    %44 = vadd.xlane.f32.xlu0 %v43
    %v45 = vpop.xlane.xlu0 %44
    %v46 = vrcp.pop 32.0
    %v47 = vmul.f32 %v36, %v46
    %v48 = vmul.f32 %v39, %v46
    %v49 = vmul.f32 %v42, %v46
    %v50 = vmul.f32 %v45, %v46
    %v51 = vsub.f32 %v29, %v47
    %v52 = vsub.f32 %v30, %v48
    %v53 = vsub.f32 %v31, %v49
    %v54 = vsub.f32 %v32, %v50
    %v55 = vmul.f32 %v51, %v51
    %v56 = vmul.f32 %v52, %v52
    %v57 = vmul.f32 %v53, %v53
    %v58 = vmul.f32 %v54, %v54
    %v59 = vsel %vm33, %v55, 0.0
    %60 = vadd.xlane.f32.xlu0 %v59
    %v61 = vpop.xlane.xlu0 %60
    %v62 = vsel %vm33, %v56, 0.0
    %63 = vadd.xlane.f32.xlu0 %v62
    %v64 = vpop.xlane.xlu0 %63
    %v65 = vsel %vm33, %v57, 0.0
    %66 = vadd.xlane.f32.xlu0 %v65
    %v67 = vpop.xlane.xlu0 %66
    %v68 = vsel %vm33, %v58, 0.0
    %69 = vadd.xlane.f32.xlu0 %v68
    %v70 = vpop.xlane.xlu0 %69
    %v71 = vmul.f32 %v61, %v46
    %v72 = vmul.f32 %v64, %v46
    %v73 = vmul.f32 %v67, %v46
    %v74 = vmul.f32 %v70, %v46
    %v75 = vadd.f32 %v71, 1e-06
    %v76 = vadd.f32 %v72, 1e-06
    %v77 = vadd.f32 %v73, 1e-06
    %v78 = vadd.f32 %v74, 1e-06
    %v79 = vrsqrt.pop %v75
    %v80 = vrsqrt.pop %v76
    %v81 = vrsqrt.pop %v77
    %v82 = vrsqrt.pop %v78
    %v83 = vmul.f32 %v51, %v79
    %v84 = vmul.f32 %v52, %v80
    %v85 = vmul.f32 %v53, %v81
    %v86 = vmul.f32 %v54, %v82
    %v87 = vld [vmem:[%s1] sm:$0x1]
    %v89 = vlaneseq
    %v90 = vshrl.u32 %v89, 7
    %v91 = vsub.s32 0, %v90
    %v92 = vrot.slane %v87, %v91
    %v94 = vmul.f32 %v83, %v92
    %v95 = vmul.f32 %v84, %v92
    %v96 = vmul.f32 %v85, %v92
    %v97 = vmul.f32 %v86, %v92
    %v98 = vld [vmem:[%s2] sm:$0x1]
    %v100 = vlaneseq
    %v101 = vshrl.u32 %v100, 7
    %v102 = vsub.s32 0, %v101
    %v103 = vrot.slane %v98, %v102
    %v105 = vadd.f32 %v94, %v103
    %v106 = vadd.f32 %v95, %v103
    %v107 = vadd.f32 %v96, %v103
    %v108 = vadd.f32 %v97, %v103
    %v109 = vpack.c.bf16 %v106, %v105
    %v110 = vpack.c.bf16 %v108, %v107
    %v113 = vunpack.c.l.b16 %v109
    %v114 = vunpack.c.h.b16 %v109
    %v115 = vunpack.c.l.b16 %v110
    %v116 = vunpack.c.h.b16 %v110
    %v117 = vpack.c.b16 %v113, %v113
    %v118 = vpack.c.b16 %v114, %v114
    %v119 = vpack.c.b16 %v115, %v115
    %v120 = vpack.c.b16 %v116, %v116
    %vm125 = vcmask 257024
    %126 = vst.msk [vmem:[#allocation2] sm:$0xf] %vm125, %v117
    %127 = vst.msk [vmem:[#allocation2 + $0x4] sm:$0xf] %vm125, %v118
    %128 = vst.msk [vmem:[#allocation2 + $0x8] sm:$0xf] %vm125, %v119
    %129 = vst.msk [vmem:[#allocation2 + $0xc] sm:$0xf] %vm125, %v120
  $region25: #{vit_lora_forward.16} parent=0 // pred_fallthru
    _
  %v130 = vld [vmem:[#allocation2] sm:$0xf]
  %v131 = vld [vmem:[#allocation2 + $0x4] sm:$0xf]
  %v132 = vld [vmem:[#allocation2 + $0x8] sm:$0xf]
  %v133 = vld [vmem:[#allocation2 + $0xc] sm:$0xf]
  %v134 = vld [vmem:[%s3] sm:$0xf]
  %v135 = vld [vmem:[%s3 + $0x4] sm:$0xf]
  %v136 = vld [vmem:[%s3 + $0x8] sm:$0xf]
  %v137 = vld [vmem:[%s3 + $0xc] sm:$0xf]
  %v138 = vld [vmem:[%s4] sm:$0x1]
  %v140 = vlaneseq
  %v141 = vshrl.u32 %v140, 7
  %v142 = vsub.s32 0, %v141
  %v143 = vrot.slane %v138, %v142
  %v149 = vunpack.c.l.b16 %v130
  %v150 = vunpack.c.l.b16 %v131
  %v151 = vunpack.c.l.b16 %v132
  %v152 = vunpack.c.l.b16 %v133
  %v153 = vpack.c.b16 %v150, %v149
  %v154 = vpack.c.b16 %v152, %v151
  %v159 = vunpack.c.l.b16 %v134
  %v160 = vunpack.c.l.b16 %v135
  %v161 = vunpack.c.l.b16 %v136
  %v162 = vunpack.c.l.b16 %v137
  %v163 = vpack.c.b16 %v160, %v159
  %v164 = vpack.c.b16 %v162, %v161
  %vm167 = vcmask 261120
  %v169 = vsel %vm167, %v153, 0
  %v172 = vsel %vm167, %v154, 0
  %174 = vmatprep.subr.bf16.mxu0 0
  %175 = vmatpush1.bf16.msra.mxu0 0
  %176 = vmatprep.subr.bf16.mxu0 0
  %177 = vmatpush1.bf16.msra.mxu0 0
  %178 = vmatprep.subr.bf16.mxu0 0
  %179 = vmatpush1.bf16.msra.mxu0 0
  %180 = vmatprep.subr.bf16.mxu0 0
  %181 = vmatpush1.bf16.msra.mxu0 0
  %182 = vmatprep.subr.bf16.mxu0 0
  %183 = vmatpush1.bf16.msra.mxu0 0
  %184 = vmatprep.subr.bf16.mxu0 0
  %185 = vmatpush1.bf16.msra.mxu0 0
  %186 = vmatprep.subr.bf16.mxu0 0
  %187 = vmatpush1.bf16.msra.mxu0 %v164
  %188 = vmatprep.subr.bf16.mxu0 0
  %189 = vmatpush1.bf16.msra.mxu0 %v163
  %190 = vmatprep.subr.bf16.mxu0 0
  %191 = vmatpush2.bf16.msra.mxu0 0
  %192 = vmatprep.subr.bf16.mxu0 0
  %193 = vmatpush2.bf16.msra.mxu0 0
  %194 = vmatprep.subr.bf16.mxu0 0
  %195 = vmatpush2.bf16.msra.mxu0 0
  %196 = vmatprep.subr.bf16.mxu0 0
  %197 = vmatpush2.bf16.msra.mxu0 0
  %198 = vmatprep.subr.bf16.mxu0 0
  %199 = vmatpush2.bf16.msra.mxu0 0
  %200 = vmatprep.subr.bf16.mxu0 0
  %201 = vmatpush2.bf16.msra.mxu0 0
  %202 = vmatprep.subr.bf16.mxu0 0
  %203 = vmatpush2.bf16.msra.mxu0 0
  %204 = vmatprep.subr.bf16.mxu0 0
  %205 = vmatpush2.bf16.msra.mxu0 0
  %206 = vmatprep.mubr.bf16.mxu0 0
  %207 = vmatmul.mubr.bf16.gmra.mxu0 %v169
  %v208 = vpop.f32.mrf.mxu0
  %v209 = vadd.f32 %v143, %v208
  %v210 = vpop.f32.mrf.mxu0
  %v211 = vpop.f32.mrf.mxu0
  %v212 = vadd.f32 %v143, %v211
  %v213 = vpop.f32.mrf.mxu0
  %214 = vmatprep.mubr.bf16.mxu0 0
  %215 = vmatmul.mubr.bf16.gmra.mxu0 %v172
  %v216 = vpop.f32.mrf.mxu0
  %v217 = vadd.f32 %v143, %v216
  %v218 = vpop.f32.mrf.mxu0
  %v219 = vpop.f32.mrf.mxu0
  %v220 = vadd.f32 %v143, %v219
  %v221 = vpop.f32.mrf.mxu0
  %222 = vdwg.mxu0
  %v223 = vmul.f32 %v209, 0.5
  %v224 = vmul.f32 %v212, 0.5
  %v225 = vmul.f32 %v217, 0.5
  %v226 = vmul.f32 %v220, 0.5
  %v227 = vmul.f32 %v209, 0.70710677
  %v228 = vmul.f32 %v212, 0.70710677
  %v229 = vmul.f32 %v217, 0.70710677
  %v230 = vmul.f32 %v220, 0.70710677
  %v231 = verf.f32.pop %v227
  %v232 = verf.f32.pop %v228
  %v233 = verf.f32.pop %v229
  %v234 = verf.f32.pop %v230
  %v235 = vadd.f32 %v231, 1.0
  %v236 = vadd.f32 %v232, 1.0
  %v237 = vadd.f32 %v233, 1.0
  %v238 = vadd.f32 %v234, 1.0
  %v239 = vmul.f32 %v223, %v235
  %v240 = vmul.f32 %v224, %v236
  %v241 = vmul.f32 %v225, %v237
  %v242 = vmul.f32 %v226, %v238
  %v243 = vpack.c.bf16 %v240, %v239
  %v244 = vpack.c.bf16 %v242, %v241
  %v247 = vunpack.c.l.b16 %v243
  %v248 = vunpack.c.h.b16 %v243
  %v249 = vunpack.c.l.b16 %v244
  %v250 = vunpack.c.h.b16 %v244
  %v251 = vpack.c.b16 %v247, %v247
  %v252 = vpack.c.b16 %v248, %v248
  %v253 = vpack.c.b16 %v249, %v249
  %v254 = vpack.c.b16 %v250, %v250
  %259 = vst [vmem:[%s5] sm:$0xf] %v251
  %260 = vst [vmem:[%s5 + $0x4] sm:$0xf] %v252
  %261 = vst [vmem:[%s5 + $0x8] sm:$0xf] %v253
  %262 = vst [vmem:[%s5 + $0xc] sm:$0xf] %v254
  // Predicated region
  $region26: #{vit_lora_forward.16} parent=0 // pred_check
    _
  $region27: #{vit_lora_forward.16} parent=0 // pred_check_branch
    %264 = sbr.rel (0) target = $region29
  $region28: #{vit_lora_forward.16} parent=0 // pred_region
    _
  $region29: #{vit_lora_forward.16} parent=0 // pred_fallthru
    _
  // Predicated region
  $region30: #{vit_lora_forward.16} parent=0 // pred_check
    _
  $region31: #{vit_lora_forward.16} parent=0 // pred_check_branch
    %266 = sbr.rel (0) target = $region33
  $region32: #{vit_lora_forward.16} parent=0 // pred_region
    _
  $region33: #{vit_lora_forward.16} parent=0 // pred_fallthru
    _

// kernel: vit_lora_forward.17
$region0: #{vit_lora_forward.17}
  #allocation0 [shape = 'u32[]', space=smem, size = 0x4, offset = 0x4, fixed_abs, tag = 'smem constant byte address 0x4 - core index']
  #allocation1 [shape = 'u32[144,128]{1,0:T(1,128)}', space=vmem, size = 0x12000, scoped, tag = 'internal scratch']
  #allocation2 [shape = 'f32[32,32]{1,0:T(8,128)}', space=vmem, size = 0x4000, scoped, tag = 'scratch operand']
  %s0 = inlined_call_operand.vmem [shape: bf16[32,128], index: 0, kind: input, shape index: {}]
  %s1 = inlined_call_operand.vmem [shape: bf16[128,32], index: 1, kind: input, shape index: {}]
  %s2 = inlined_call_operand.vmem [shape: f32[1,32], index: 2, kind: input, shape index: {}]
  %s3 = inlined_call_operand.vmem [shape: bf16[32,32], index: 3, kind: input, shape index: {}]
  %s4 = inlined_call_operand.vmem [shape: bf16[32,32], index: 4, kind: output, shape index: {}]
  %s5 = sld [smem:[#allocation0]]
  $region34: #{vit_lora_forward.17} parent=0
    _
  %s7 = ssub.s32 1, %s5
  %s8 = scalar_select 0, %s7, %s5
  // Predicated region
  $region2: #{vit_lora_forward.17} parent=0 // pred_check
    _
  $region3: #{vit_lora_forward.17} parent=0 // pred_check_branch
    %10 = sbr.rel (0) target = $region5
  $region4: #{vit_lora_forward.17} parent=0 // pred_region
    _
  $region5: #{vit_lora_forward.17} parent=0 // pred_fallthru
    _
  // Predicated region
  $region6: #{vit_lora_forward.17} parent=0 // pred_check
    _
  $region7: #{vit_lora_forward.17} parent=0 // pred_check_branch
    %12 = sbr.rel (0) target = $region9
  $region8: #{vit_lora_forward.17} parent=0 // pred_region
    _
  $region9: #{vit_lora_forward.17} parent=0 // pred_fallthru
    _
  // Predicated region
  $region10: #{vit_lora_forward.17} parent=0 // pred_check
    _
  $region11: #{vit_lora_forward.17} parent=0 // pred_check_branch
    %14 = sbr.rel (0) target = $region13
  $region12: #{vit_lora_forward.17} parent=0 // pred_region
    _
  $region13: #{vit_lora_forward.17} parent=0 // pred_fallthru
    _
  // Predicated region
  $region14: #{vit_lora_forward.17} parent=0 // pred_check
    _
  $region15: #{vit_lora_forward.17} parent=0 // pred_check_branch
    %16 = sbr.rel (0) target = $region17
  $region16: #{vit_lora_forward.17} parent=0 // pred_region
    _
  $region17: #{vit_lora_forward.17} parent=0 // pred_fallthru
    _
  %p18 = scmp.eq.s32.totalorder 0, 0
  // Predicated region
  $region18: #{vit_lora_forward.17} parent=0 // pred_check
    %p19 = pneg %p18
  $region19: #{vit_lora_forward.17} parent=0 // pred_check_branch
    %21 = sbr.rel (%p19) target = $region21
  $region20: #{vit_lora_forward.17} parent=0 // pred_region
    %v22 = vld [vmem:[%s2] sm:$0x1]
    %v24 = vlaneseq
    %v25 = vshrl.u32 %v24, 7
    %v26 = vsub.s32 0, %v25
    %v27 = vrot.slane %v22, %v26
    %vm29 = vcmask 261120
    %30 = vst.msk [vmem:[#allocation2] sm:$0xff] %vm29, %v27
    %31 = vst.msk [vmem:[#allocation2 + $0x8] sm:$0xff] %vm29, %v27
    %32 = vst.msk [vmem:[#allocation2 + $0x10] sm:$0xff] %vm29, %v27
    %33 = vst.msk [vmem:[#allocation2 + $0x18] sm:$0xff] %vm29, %v27
  $region21: #{vit_lora_forward.17} parent=0 // pred_fallthru
    _
  %v34 = vld [vmem:[#allocation2] sm:$0xff]
  %v35 = vld [vmem:[#allocation2 + $0x8] sm:$0xff]
  %v36 = vld [vmem:[#allocation2 + $0x10] sm:$0xff]
  %v37 = vld [vmem:[#allocation2 + $0x18] sm:$0xff]
  %v38 = vld [vmem:[%s0] sm:$0xf]
  %v39 = vld [vmem:[%s0 + $0x4] sm:$0xf]
  %v40 = vld [vmem:[%s0 + $0x8] sm:$0xf]
  %v41 = vld [vmem:[%s0 + $0xc] sm:$0xf]
  %v42 = vld [vmem:[%s1] sm:$0xf]
  %v43 = vld [vmem:[%s1 + $0x4] sm:$0xf]
  %v44 = vld [vmem:[%s1 + $0x8] sm:$0xf]
  %v45 = vld [vmem:[%s1 + $0xc] sm:$0xf]
  %v46 = vld [vmem:[%s1 + $0x10] sm:$0xf]
  %v47 = vld [vmem:[%s1 + $0x14] sm:$0xf]
  %v48 = vld [vmem:[%s1 + $0x18] sm:$0xf]
  %v49 = vld [vmem:[%s1 + $0x1c] sm:$0xf]
  %v50 = vld [vmem:[%s1 + $0x20] sm:$0xf]
  %v51 = vld [vmem:[%s1 + $0x24] sm:$0xf]
  %v52 = vld [vmem:[%s1 + $0x28] sm:$0xf]
  %v53 = vld [vmem:[%s1 + $0x2c] sm:$0xf]
  %v54 = vld [vmem:[%s1 + $0x30] sm:$0xf]
  %v55 = vld [vmem:[%s1 + $0x34] sm:$0xf]
  %v56 = vld [vmem:[%s1 + $0x38] sm:$0xf]
  %v57 = vld [vmem:[%s1 + $0x3c] sm:$0xf]
  %v62 = vunpack.c.l.b16 %v38
  %v63 = vunpack.c.l.b16 %v39
  %v64 = vunpack.c.l.b16 %v40
  %v65 = vunpack.c.l.b16 %v41
  %v66 = vpack.c.b16 %v63, %v62
  %v67 = vpack.c.b16 %v65, %v64
  %v86 = vunpack.c.l.b16 %v42
  %v87 = vunpack.c.l.b16 %v43
  %v88 = vunpack.c.l.b16 %v44
  %v89 = vunpack.c.l.b16 %v45
  %v90 = vunpack.c.l.b16 %v46
  %v91 = vunpack.c.l.b16 %v47
  %v92 = vunpack.c.l.b16 %v48
  %v93 = vunpack.c.l.b16 %v49
  %v94 = vunpack.c.l.b16 %v50
  %v95 = vunpack.c.l.b16 %v51
  %v96 = vunpack.c.l.b16 %v52
  %v97 = vunpack.c.l.b16 %v53
  %v98 = vunpack.c.l.b16 %v54
  %v99 = vunpack.c.l.b16 %v55
  %v100 = vunpack.c.l.b16 %v56
  %v101 = vunpack.c.l.b16 %v57
  %v102 = vpack.c.b16 %v87, %v86
  %v103 = vpack.c.b16 %v89, %v88
  %v104 = vpack.c.b16 %v91, %v90
  %v105 = vpack.c.b16 %v93, %v92
  %v106 = vpack.c.b16 %v95, %v94
  %v107 = vpack.c.b16 %v97, %v96
  %v108 = vpack.c.b16 %v99, %v98
  %v109 = vpack.c.b16 %v101, %v100
  %118 = vmatprep.subr.bf16.mxu0 0
  %119 = vmatpush1.bf16.msra.mxu0 %v109
  %120 = vmatprep.subr.bf16.mxu0 0
  %121 = vmatpush1.bf16.msra.mxu0 %v108
  %122 = vmatprep.subr.bf16.mxu0 0
  %123 = vmatpush1.bf16.msra.mxu0 %v107
  %124 = vmatprep.subr.bf16.mxu0 0
  %125 = vmatpush1.bf16.msra.mxu0 %v106
  %126 = vmatprep.subr.bf16.mxu0 0
  %127 = vmatpush1.bf16.msra.mxu0 %v105
  %128 = vmatprep.subr.bf16.mxu0 0
  %129 = vmatpush1.bf16.msra.mxu0 %v104
  %130 = vmatprep.subr.bf16.mxu0 0
  %131 = vmatpush1.bf16.msra.mxu0 %v103
  %132 = vmatprep.subr.bf16.mxu0 0
  %133 = vmatpush1.bf16.msra.mxu0 %v102
  %134 = vmatprep.subr.bf16.mxu0 0
  %135 = vmatpush2.bf16.msra.mxu0 0
  %136 = vmatprep.subr.bf16.mxu0 0
  %137 = vmatpush2.bf16.msra.mxu0 0
  %138 = vmatprep.subr.bf16.mxu0 0
  %139 = vmatpush2.bf16.msra.mxu0 0
  %140 = vmatprep.subr.bf16.mxu0 0
  %141 = vmatpush2.bf16.msra.mxu0 0
  %142 = vmatprep.subr.bf16.mxu0 0
  %143 = vmatpush2.bf16.msra.mxu0 0
  %144 = vmatprep.subr.bf16.mxu0 0
  %145 = vmatpush2.bf16.msra.mxu0 0
  %146 = vmatprep.subr.bf16.mxu0 0
  %147 = vmatpush2.bf16.msra.mxu0 0
  %148 = vmatprep.subr.bf16.mxu0 0
  %149 = vmatpush2.bf16.msra.mxu0 0
  %150 = vmatprep.mubr.bf16.mxu0 0
  %151 = vmatmul.mubr.bf16.gmra.mxu0 %v66
  %v152 = vpop.f32.mrf.mxu0
  %v153 = vadd.f32 0.0, %v152
  %v154 = vpop.f32.mrf.mxu0
  %v155 = vpop.f32.mrf.mxu0
  %v156 = vadd.f32 0.0, %v155
  %v157 = vpop.f32.mrf.mxu0
  %158 = vmatprep.mubr.bf16.mxu0 0
  %159 = vmatmul.mubr.bf16.gmra.mxu0 %v67
  %v160 = vpop.f32.mrf.mxu0
  %v161 = vadd.f32 0.0, %v160
  %v162 = vpop.f32.mrf.mxu0
  %v163 = vpop.f32.mrf.mxu0
  %v164 = vadd.f32 0.0, %v163
  %v165 = vpop.f32.mrf.mxu0
  %166 = vdwg.mxu0
  %v167 = vadd.f32 %v34, %v153
  %v168 = vadd.f32 %v35, %v156
  %v169 = vadd.f32 %v36, %v161
  %v170 = vadd.f32 %v37, %v164
  %vm171 = vcmask 261120
  %172 = vst.msk [vmem:[#allocation2] sm:$0xff] %vm171, %v167
  %173 = vst.msk [vmem:[#allocation2 + $0x8] sm:$0xff] %vm171, %v168
  %174 = vst.msk [vmem:[#allocation2 + $0x10] sm:$0xff] %vm171, %v169
  %175 = vst.msk [vmem:[#allocation2 + $0x18] sm:$0xff] %vm171, %v170
  // Predicated region
  $region22: #{vit_lora_forward.17} parent=0 // pred_check
    %p176 = pneg %p18
  $region23: #{vit_lora_forward.17} parent=0 // pred_check_branch
    %178 = sbr.rel (%p176) target = $region25
  $region24: #{vit_lora_forward.17} parent=0 // pred_region
    %v179 = vld [vmem:[#allocation2] sm:$0xff]
    %v180 = vld [vmem:[#allocation2 + $0x8] sm:$0xff]
    %v181 = vld [vmem:[#allocation2 + $0x10] sm:$0xff]
    %v182 = vld [vmem:[#allocation2 + $0x18] sm:$0xff]
    %v183 = vld [vmem:[%s3] sm:$0xf]
    %v184 = vld [vmem:[%s3 + $0x4] sm:$0xf]
    %v185 = vld [vmem:[%s3 + $0x8] sm:$0xf]
    %v186 = vld [vmem:[%s3 + $0xc] sm:$0xf]
    %v187 = vunpack.c.l.bf16 %v183
    %v188 = vunpack.c.l.bf16 %v184
    %v189 = vunpack.c.l.bf16 %v185
    %v190 = vunpack.c.l.bf16 %v186
    %v191 = vadd.f32 %v179, %v187
    %v192 = vadd.f32 %v180, %v188
    %v193 = vadd.f32 %v181, %v189
    %v194 = vadd.f32 %v182, %v190
    %v195 = vpack.c.bf16 %v192, %v191
    %v196 = vpack.c.bf16 %v194, %v193
    %v199 = vunpack.c.l.b16 %v195
    %v200 = vunpack.c.h.b16 %v195
    %v201 = vunpack.c.l.b16 %v196
    %v202 = vunpack.c.h.b16 %v196
    %v203 = vpack.c.b16 %v199, %v199
    %v204 = vpack.c.b16 %v200, %v200
    %v205 = vpack.c.b16 %v201, %v201
    %v206 = vpack.c.b16 %v202, %v202
    %vm211 = vcmask 257024
    %212 = vst.msk [vmem:[%s4] sm:$0xf] %vm211, %v203
    %213 = vst.msk [vmem:[%s4 + $0x4] sm:$0xf] %vm211, %v204
    %214 = vst.msk [vmem:[%s4 + $0x8] sm:$0xf] %vm211, %v205
    %215 = vst.msk [vmem:[%s4 + $0xc] sm:$0xf] %vm211, %v206
  $region25: #{vit_lora_forward.17} parent=0 // pred_fallthru
    _
  // Predicated region
  $region26: #{vit_lora_forward.17} parent=0 // pred_check
    _
  $region27: #{vit_lora_forward.17} parent=0 // pred_check_branch
    %217 = sbr.rel (0) target = $region29
  $region28: #{vit_lora_forward.17} parent=0 // pred_region
    _
  $region29: #{vit_lora_forward.17} parent=0 // pred_fallthru
    _
  // Predicated region
  $region30: #{vit_lora_forward.17} parent=0 // pred_check
    _
  $region31: #{vit_lora_forward.17} parent=0 // pred_check_branch
    %219 = sbr.rel (0) target = $region33
  $region32: #{vit_lora_forward.17} parent=0 // pred_region
    _
  $region33: #{vit_lora_forward.17} parent=0 // pred_fallthru
    _

</llo_original>
